<compile_context>
chip_gen: v7x
topology: tpu7x:2x2x1
jax: 0.10.0
libtpu: 0.0.40
codegen_flags: <defaults>
</compile_context>

<pallas_src>
import jax
import jax.numpy as jnp
import numpy as np
from jax.experimental import pallas as pl
from jax.experimental.pallas import tpu as pltpu

# Small demo shapes standing in for the module's (input=999, hidden=600, L=1000, N=100).
SEQ = 8       # sequence length (L)
BATCH = 2     # batch size (N) = x[0].shape[0], the narrow() length
INPUT = 32    # stands in for 999
HIDDEN = 32   # stands in for 600


def _round_up(x, m):
    return (x + m - 1) // m * m


def _nbytes(shape, dtype):
    return int(np.prod(shape)) * jnp.dtype(dtype).itemsize


def _disc_kernel(x_ref, wih0_ref, whh0_ref, b0_ref, w1_hbm_ref, b1_ref,
                 wmlp_ref, bmlp_ref, out_ref,
                 w1_ref, z0_ref, feat_ref, w1_sem):
    """2-layer LSTM recurrence (single batch row, replicated on 8 sublanes) + head.

    x_ref:      (Tp, I)    bf16 -- time steps 0..T-1 of batch row B-1 (Tp = T padded to 8)
    wih0_ref:   (I, 4Hp)   bf16 -- layer-0 input weights (gate blocks zero-padded to Hp)
    whh0_ref:   (Hp, 4Hp)  bf16 -- layer-0 hidden weights
    b0_ref:     (1, 4Hp)   f32  -- b_ih0 + b_hh0
    w1_hbm_ref: (2Hp, 4Hp) bf16 -- stacked [Wih1; Whh1], left in HBM (pl.ANY)
    b1_ref:     (1, 4Hp)   f32
    wmlp_ref:   (Hp, 1) f32, bmlp_ref: (1, 1) f32
    out_ref:    (B, 1)     f32  -- B == T
    w1_ref:     VMEM scratch (2Hp, 4Hp) bf16 -- DMA destination for w1
    z0_ref:     VMEM scratch (Tp, 4Hp) f32   -- hoisted layer-0 input projection
    feat_ref:   VMEM scratch (Tp, Hp) f32    -- outputs[:, -1, :][:T] (padding rows zeroed)
    w1_sem:     DMA semaphore
    """
    Hp = whh0_ref.shape[0]
    T = out_ref.shape[0]                       # number of real recurrence steps (== batch)

    # --- Start the layer-1 weight HBM->VMEM DMA; it overlaps the hoisted Z0 matmul. ---
    w1_copy = pltpu.make_async_copy(w1_hbm_ref, w1_ref, w1_sem)
    w1_copy.start()

    # Rows >= T of feat_ref are never written by the loop; zero them once so the head's
    # full-tile matmul reads defined data.  (Those rows are discarded by res[:T] anyway --
    # keep that invariant if the head is ever changed.)
    feat_ref[...] = jnp.zeros_like(feat_ref)

    # --- Hoisted, time-invariant layer-0 input projection: one big bf16 MXU matmul. ---
    z0_ref[...] = (jnp.dot(x_ref[...], wih0_ref[...],
                           preferred_element_type=jnp.float32) + b0_ref[...])

    # Layer-1 weights are first needed inside the loop; wait after Z0 has been issued.
    w1_copy.wait()

    def gates(z, c):
        # PyTorch gate order i, f, g, o.  Gate blocks are Hp-aligned (Hp % 128 == 0),
        # so these slices are free vreg views (no cross-lane relayout per step).
        i = jax.nn.sigmoid(z[:, 0 * Hp:1 * Hp])
        f = jax.nn.sigmoid(z[:, 1 * Hp:2 * Hp])
        g = jnp.tanh(z[:, 2 * Hp:3 * Hp])
        o = jax.nn.sigmoid(z[:, 3 * Hp:4 * Hp])
        c_new = f * c + i * g
        return o * jnp.tanh(c_new), c_new

    def step(t, carry):
        h0, c0, h1, c1 = carry
        # Layer 0: only the hidden-state matmul remains in the recurrence; the hoisted
        # input-projection row broadcasts over the 8 replicated sublanes.
        z0 = z0_ref[pl.ds(t, 1), :] + jnp.dot(
            h0.astype(jnp.bfloat16), whh0_ref[...],
            preferred_element_type=jnp.float32)
        h0, c0 = gates(z0, c0)
        # Layer 1: two dots against the two halves of the stacked [Wih1; Whh1] (static,
        # tile-aligned row slices) accumulated into one f32 z1 -- no activation concat.
        z1 = (jnp.dot(h0.astype(jnp.bfloat16), w1_ref[pl.ds(0, Hp), :],
                      preferred_element_type=jnp.float32)
              + jnp.dot(h1.astype(jnp.bfloat16), w1_ref[pl.ds(Hp, Hp), :],
                        preferred_element_type=jnp.float32)
              + b1_ref[...])
        h1, c1 = gates(z1, c1)
        # Direct single-row store (all 8 sublanes of h1 are identical).  The vst slot has
        # slack; dropping the old fblk/where accumulator frees vregs in the loop body.
        feat_ref[pl.ds(t, 1), :] = h1[0:1, :]
        return h0, c0, h1, c1

    zeros = jnp.zeros((8, Hp), jnp.float32)
    jax.lax.fori_loop(0, T, step, (zeros, zeros, zeros, zeros), unroll=2)

    # --- Head: ReLU -> Linear(H, 1) -> sigmoid; keep first B (= T) rows (torch narrow). ---
    feat = jnp.maximum(feat_ref[...], 0.0)                              # (Tp, Hp)
    res = jnp.dot(feat, wmlp_ref[...],
                  preferred_element_type=jnp.float32) + bmlp_ref[...]   # (Tp, 1)
    out_ref[...] = jax.nn.sigmoid(res[:T, :])


def discriminator_forward(x, prep):
    """x: (seq, batch, input_size) float32 -> (batch, 1) float32."""
    seq, B, _ = x.shape
    # torch narrow(0, 0, batch) on a length-seq axis requires seq >= batch.
    assert seq >= B, "discriminator forward requires seq >= batch (torch narrow would raise)"
    Hp = prep["whh0_t"].shape[0]
    T = B                                  # only time steps < batch reach the output
    Tp = _round_up(T, 8)

    # Dataflow exploit: only batch row B-1 ever reaches out (outputs[:, -1, :]),
    # and only its first B time steps survive narrow(0, 0, B).  Cast to bf16 here so the
    # Z0 matmul is a true bf16 x bf16 MXU op (no implicit re-promotion of the weights).
    x_s = jnp.pad(x[:T, B - 1, :], ((0, Tp - T), (0, 0))).astype(jnp.bfloat16)   # (Tp, I)

    # Size the scoped-VMEM limit to the actual working set (resident inputs + the DMA'd
    # w1 VMEM copy + f32 scratch), with headroom; clamp to <= 56 MiB for v7x.
    ws = (_nbytes(x_s.shape, x_s.dtype)
          + sum(_nbytes(v.shape, v.dtype) for v in prep.values())
          + _nbytes(prep["w1"].shape, prep["w1"].dtype)        # VMEM copy of HBM-resident w1
          + _nbytes((Tp, 4 * Hp), jnp.float32)                 # z0 scratch
          + _nbytes((Tp, Hp), jnp.float32))                    # feat scratch
    vmem_limit = int(min(max(2 * ws + (4 << 20), 32 << 20), 56 << 20))

    vmem = pl.BlockSpec(memory_space=pltpu.MemorySpace.VMEM)
    hbm = pl.BlockSpec(memory_space=pl.ANY)
    return pl.pallas_call(
        _disc_kernel,
        out_shape=jax.ShapeDtypeStruct((B, 1), jnp.float32),
        in_specs=[vmem, vmem, vmem, vmem, hbm, vmem, vmem, vmem],
        out_specs=vmem,
        scratch_shapes=[pltpu.VMEM((2 * Hp, 4 * Hp), jnp.bfloat16),   # DMA'd [Wih1; Whh1]
                        pltpu.VMEM((Tp, 4 * Hp), jnp.float32),        # hoisted Z0
                        pltpu.VMEM((Tp, Hp), jnp.float32),            # feat rows
                        pltpu.SemaphoreType.DMA(())],                 # w1 copy semaphore
        compiler_params=pltpu.CompilerParams(vmem_limit_bytes=vmem_limit),
    )(x_s, prep["wih0_t"], prep["whh0_t"], prep["b0"],
      prep["w1"], prep["b1"], prep["wmlp_t"], prep["bmlp"])


def init_params(key, input_size, hidden):
    """Deterministic synthetic params in PyTorch layout, U(-1/sqrt(H), 1/sqrt(H))."""
    k = 1.0 / np.sqrt(hidden)
    keys = jax.random.split(key, 10)
    u = lambda kk, shape: jax.random.uniform(kk, shape, jnp.float32, -k, k)
    return {
        "wih0": u(keys[0], (4 * hidden, input_size)),
        "whh0": u(keys[1], (4 * hidden, hidden)),
        "b_ih0": u(keys[2], (4 * hidden,)),
        "b_hh0": u(keys[3], (4 * hidden,)),
        "wih1": u(keys[4], (4 * hidden, hidden)),
        "whh1": u(keys[5], (4 * hidden, hidden)),
        "b_ih1": u(keys[6], (4 * hidden,)),
        "b_hh1": u(keys[7], (4 * hidden,)),
        "wmlp": u(keys[8], (1, hidden)),
        "bmlp": u(keys[9], (1,)),
    }


def prepare_params(raw, hidden):
    """One-time glue: transpose, stack layer-1 weights, pad every gate block H -> Hp
    (128-multiple), and cast the three big matrices to bf16.

    Zero-padding gates/biases keeps padded hidden units exactly zero through the
    recurrence (sigmoid(0)*tanh(0) updates, zero-padded whh contraction rows); zeros are
    exact in bf16, so results match the unpadded model up to bf16 weight rounding.
    """
    Hp = _round_up(hidden, 128)

    def gate_pad(w_t):                      # (R, 4H) -> (R, 4Hp), per-gate zero pad
        R = w_t.shape[0]
        return jnp.pad(w_t.reshape(R, 4, hidden),
                       ((0, 0), (0, 0), (0, Hp - hidden))).reshape(R, 4 * Hp)

    def row_pad(w, rows):
        return jnp.pad(w, ((0, rows - w.shape[0]), (0, 0)))

    bf16 = jnp.bfloat16
    wih0_t = gate_pad(raw["wih0"].T).astype(bf16)                         # (I, 4Hp)
    whh0_t = row_pad(gate_pad(raw["whh0"].T), Hp).astype(bf16)            # (Hp, 4Hp)
    b0 = gate_pad((raw["b_ih0"] + raw["b_hh0"])[None, :])                 # (1, 4Hp) f32
    w1 = jnp.concatenate([row_pad(gate_pad(raw["wih1"].T), Hp),
                          row_pad(gate_pad(raw["whh1"].T), Hp)],
                         axis=0).astype(bf16)                             # (2Hp, 4Hp)
    b1 = gate_pad((raw["b_ih1"] + raw["b_hh1"])[None, :])                 # (1, 4Hp) f32
    wmlp_t = row_pad(raw["wmlp"].T, Hp)                                   # (Hp, 1) f32
    bmlp = raw["bmlp"][None, :]                                           # (1, 1) f32
    return {"wih0_t": wih0_t, "whh0_t": whh0_t, "b0": b0,
            "w1": w1, "b1": b1, "wmlp_t": wmlp_t, "bmlp": bmlp}


def reference_forward(x, p):
    """Pure-JAX literal reference of the torch module (full batch, full seq, f32)."""
    seq, B, _ = x.shape
    H = p["whh0"].shape[1]
    b0 = p["b_ih0"] + p["b_hh0"]
    b1 = p["b_ih1"] + p["b_hh1"]

    def cell(xt, h, c, wih, whh, b):
        z = xt @ wih.T + h @ whh.T + b
        i = jax.nn.sigmoid(z[:, :H])
        f = jax.nn.sigmoid(z[:, H:2 * H])
        g = jnp.tanh(z[:, 2 * H:3 * H])
        o = jax.nn.sigmoid(z[:, 3 * H:])
        c = f * c + i * g
        h = o * jnp.tanh(c)
        return h, c

    h0 = c0 = h1 = c1 = jnp.zeros((B, H), jnp.float32)
    outs = []
    for t in range(seq):
        h0, c0 = cell(x[t], h0, c0, p["wih0"], p["whh0"], b0)
        h1, c1 = cell(h0, h1, c1, p["wih1"], p["whh1"], b1)
        outs.append(h1)
    outputs = jnp.stack(outs)                    # (seq, B, H)
    feat = jax.nn.relu(outputs[:, -1, :])        # (seq, H)   -- last BATCH element
    res = feat @ p["wmlp"].T + p["bmlp"]         # (seq, 1)
    return jax.nn.sigmoid(res[:B])               # narrow(0, 0, B)


if __name__ == "__main__":
    key = jax.random.PRNGKey(0)
    kx, kp = jax.random.split(key)
    x = jax.random.normal(kx, (SEQ, BATCH, INPUT), jnp.float32)
    raw = init_params(kp, INPUT, HIDDEN)
    prep = prepare_params(raw, HIDDEN)

    y = discriminator_forward(x, prep)
    y = jax.block_until_ready(y)

    y_ref = reference_forward(x, raw)
    # Tolerance covers bf16 weight/activation rounding on the MXU path (f32 accumulation,
    # f32 recurrence state) plus the matmul regrouping vs. the per-step f32 reference.
    np.testing.assert_allclose(np.asarray(y), np.asarray(y_ref), rtol=2e-2, atol=2e-2)
    assert y.shape == (BATCH, 1)
    print("KERNEL_OK")
</pallas_src>

<mosaic_0001>
module attributes {stable_mosaic.version = 11 : i64} {
  func.func @_disc_kernel(%arg0: memref<8x32xbf16, #tpu.memory_space<vmem>>, %arg1: memref<32x512xbf16, #tpu.memory_space<vmem>>, %arg2: memref<128x512xbf16, #tpu.memory_space<vmem>>, %arg3: memref<1x512xf32, #tpu.memory_space<vmem>>, %arg4: memref<256x512xbf16, #tpu.memory_space<any>>, %arg5: memref<1x512xf32, #tpu.memory_space<vmem>>, %arg6: memref<128x1xf32, #tpu.memory_space<vmem>>, %arg7: memref<1x1xf32, #tpu.memory_space<vmem>>, %arg8: memref<2x1xf32, #tpu.memory_space<vmem>>, %arg9: memref<256x512xbf16, #tpu.memory_space<vmem>>, %arg10: memref<8x512xf32, #tpu.memory_space<vmem>>, %arg11: memref<8x128xf32, #tpu.memory_space<vmem>>, %arg12: memref<!tpu.dma_semaphore, #tpu.memory_space<semaphore_mem>>) attributes {dimension_semantics = [], scalar_prefetch = 0 : i64, scratch_operands = 4 : i64, tpu.core_type = #tpu.core_type<tc>} {
    tpu.enqueue_dma source(%arg4 : memref<256x512xbf16, #tpu.memory_space<any>>) target(%arg9 : memref<256x512xbf16, #tpu.memory_space<vmem>>) target_semaphore(%arg12 : memref<!tpu.dma_semaphore, #tpu.memory_space<semaphore_mem>>)
    %cst = arith.constant 0.000000e+00 : f32
    %0 = vector.broadcast %cst : f32 to vector<8x128xf32>
    %c0 = arith.constant 0 : index
    %c0_0 = arith.constant 0 : index
    %1 = vector.load %arg11[%c0, %c0_0] : memref<8x128xf32, #tpu.memory_space<vmem>>, vector<8x128xf32>
    tpu.vector_store %arg11[%c0, %c0_0], %0 {strides = array<i32>} : memref<8x128xf32, #tpu.memory_space<vmem>>, vector<8x128xf32>,
    %c0_1 = arith.constant 0 : index
    %c0_2 = arith.constant 0 : index
    %2 = vector.load %arg0[%c0_1, %c0_2] : memref<8x32xbf16, #tpu.memory_space<vmem>>, vector<8x32xbf16>
    %c0_3 = arith.constant 0 : index
    %c0_4 = arith.constant 0 : index
    %3 = vector.load %arg1[%c0_3, %c0_4] : memref<32x512xbf16, #tpu.memory_space<vmem>>, vector<32x512xbf16>
    %cst_5 = arith.constant dense<0.000000e+00> : vector<8x512xf32>
    %4 = tpu.matmul %2, %3, %cst_5 {dimension_numbers = #tpu.dot_dimension_numbers<[1], [0], [0], [1], [0, 0, 1, 1], [], []>} : vector<8x32xbf16>, vector<32x512xbf16>, vector<8x512xf32> -> vector<8x512xf32>
    %c0_6 = arith.constant 0 : index
    %c0_7 = arith.constant 0 : index
    %5 = vector.load %arg3[%c0_6, %c0_7] : memref<1x512xf32, #tpu.memory_space<vmem>>, vector<1x512xf32>
    %6 = vector.broadcast %5 : vector<1x512xf32> to vector<8x512xf32>
    %7 = arith.addf %4, %6 : vector<8x512xf32>
    %c0_8 = arith.constant 0 : index
    %c0_9 = arith.constant 0 : index
    %8 = vector.load %arg10[%c0_8, %c0_9] : memref<8x512xf32, #tpu.memory_space<vmem>>, vector<8x512xf32>
    tpu.vector_store %arg10[%c0_8, %c0_9], %7 {strides = array<i32>} : memref<8x512xf32, #tpu.memory_space<vmem>>, vector<8x512xf32>,
    tpu.wait_dma2 semaphore(%arg12 : memref<!tpu.dma_semaphore, #tpu.memory_space<semaphore_mem>>) src(%arg4 : memref<256x512xbf16, #tpu.memory_space<any>>) dst(%arg9 : memref<256x512xbf16, #tpu.memory_space<vmem>>)
    %cst_10 = arith.constant 0.000000e+00 : f32
    %9 = vector.broadcast %cst_10 : f32 to vector<8x128xf32>
    %c0_i32 = arith.constant 0 : i32
    %10 = arith.index_cast %c0_i32 : i32 to index
    %c0_11 = arith.constant 0 : index
    %11 = vector.load %arg10[%10, %c0_11] : memref<8x512xf32, #tpu.memory_space<vmem>>, vector<1x512xf32>
    %12 = arith.truncf %9 : vector<8x128xf32> to vector<8x128xbf16>
    %c0_12 = arith.constant 0 : index
    %c0_13 = arith.constant 0 : index
    %13 = vector.load %arg2[%c0_12, %c0_13] : memref<128x512xbf16, #tpu.memory_space<vmem>>, vector<128x512xbf16>
    %cst_14 = arith.constant dense<0.000000e+00> : vector<8x512xf32>
    %14 = tpu.matmul %12, %13, %cst_14 {dimension_numbers = #tpu.dot_dimension_numbers<[1], [0], [0], [1], [0, 0, 1, 1], [], []>} : vector<8x128xbf16>, vector<128x512xbf16>, vector<8x512xf32> -> vector<8x512xf32>
    %15 = vector.broadcast %11 : vector<1x512xf32> to vector<8x512xf32>
    %16 = arith.addf %15, %14 : vector<8x512xf32>
    %17 = vector.extract_strided_slice %16 {offsets = [0, 0], sizes = [8, 128], strides = [1, 1]} : vector<8x512xf32> to vector<8x128xf32>
    %18 = arith.negf %17 : vector<8x128xf32>
    %19 = math.exp %18 : vector<8x128xf32>
    %cst_15 = arith.constant 1.000000e+00 : f32
    %20 = vector.broadcast %cst_15 : f32 to vector<8x128xf32>
    %21 = arith.addf %20, %19 : vector<8x128xf32>
    %22 = arith.divf %20, %21 : vector<8x128xf32>
    %23 = vector.extract_strided_slice %16 {offsets = [0, 128], sizes = [8, 128], strides = [1, 1]} : vector<8x512xf32> to vector<8x128xf32>
    %24 = arith.negf %23 : vector<8x128xf32>
    %25 = math.exp %24 : vector<8x128xf32>
    %cst_16 = arith.constant 1.000000e+00 : f32
    %26 = vector.broadcast %cst_16 : f32 to vector<8x128xf32>
    %27 = arith.addf %26, %25 : vector<8x128xf32>
    %28 = arith.divf %26, %27 : vector<8x128xf32>
    %29 = vector.extract_strided_slice %16 {offsets = [0, 256], sizes = [8, 128], strides = [1, 1]} : vector<8x512xf32> to vector<8x128xf32>
    %30 = math.tanh %29 : vector<8x128xf32>
    %31 = vector.extract_strided_slice %16 {offsets = [0, 384], sizes = [8, 128], strides = [1, 1]} : vector<8x512xf32> to vector<8x128xf32>
    %32 = arith.negf %31 : vector<8x128xf32>
    %33 = math.exp %32 : vector<8x128xf32>
    %cst_17 = arith.constant 1.000000e+00 : f32
    %34 = vector.broadcast %cst_17 : f32 to vector<8x128xf32>
    %35 = arith.addf %34, %33 : vector<8x128xf32>
    %36 = arith.divf %34, %35 : vector<8x128xf32>
    %37 = arith.mulf %28, %9 : vector<8x128xf32>
    %38 = arith.mulf %22, %30 : vector<8x128xf32>
    %39 = arith.addf %37, %38 : vector<8x128xf32>
    %40 = math.tanh %39 : vector<8x128xf32>
    %41 = arith.mulf %36, %40 : vector<8x128xf32>
    %42 = arith.truncf %41 : vector<8x128xf32> to vector<8x128xbf16>
    %c0_18 = arith.constant 0 : index
    %c0_19 = arith.constant 0 : index
    %43 = vector.load %arg9[%c0_18, %c0_19] : memref<256x512xbf16, #tpu.memory_space<vmem>>, vector<128x512xbf16>
    %cst_20 = arith.constant dense<0.000000e+00> : vector<8x512xf32>
    %44 = tpu.matmul %42, %43, %cst_20 {dimension_numbers = #tpu.dot_dimension_numbers<[1], [0], [0], [1], [0, 0, 1, 1], [], []>} : vector<8x128xbf16>, vector<128x512xbf16>, vector<8x512xf32> -> vector<8x512xf32>
    %45 = arith.truncf %9 : vector<8x128xf32> to vector<8x128xbf16>
    %c128 = arith.constant 128 : index
    %c0_21 = arith.constant 0 : index
    %46 = vector.load %arg9[%c128, %c0_21] : memref<256x512xbf16, #tpu.memory_space<vmem>>, vector<128x512xbf16>
    %cst_22 = arith.constant dense<0.000000e+00> : vector<8x512xf32>
    %47 = tpu.matmul %45, %46, %cst_22 {dimension_numbers = #tpu.dot_dimension_numbers<[1], [0], [0], [1], [0, 0, 1, 1], [], []>} : vector<8x128xbf16>, vector<128x512xbf16>, vector<8x512xf32> -> vector<8x512xf32>
    %48 = arith.addf %44, %47 : vector<8x512xf32>
    %c0_23 = arith.constant 0 : index
    %c0_24 = arith.constant 0 : index
    %49 = vector.load %arg5[%c0_23, %c0_24] : memref<1x512xf32, #tpu.memory_space<vmem>>, vector<1x512xf32>
    %50 = vector.broadcast %49 : vector<1x512xf32> to vector<8x512xf32>
    %51 = arith.addf %48, %50 : vector<8x512xf32>
    %52 = vector.extract_strided_slice %51 {offsets = [0, 0], sizes = [8, 128], strides = [1, 1]} : vector<8x512xf32> to vector<8x128xf32>
    %53 = arith.negf %52 : vector<8x128xf32>
    %54 = math.exp %53 : vector<8x128xf32>
    %cst_25 = arith.constant 1.000000e+00 : f32
    %55 = vector.broadcast %cst_25 : f32 to vector<8x128xf32>
    %56 = arith.addf %55, %54 : vector<8x128xf32>
    %57 = arith.divf %55, %56 : vector<8x128xf32>
    %58 = vector.extract_strided_slice %51 {offsets = [0, 128], sizes = [8, 128], strides = [1, 1]} : vector<8x512xf32> to vector<8x128xf32>
    %59 = arith.negf %58 : vector<8x128xf32>
    %60 = math.exp %59 : vector<8x128xf32>
    %cst_26 = arith.constant 1.000000e+00 : f32
    %61 = vector.broadcast %cst_26 : f32 to vector<8x128xf32>
    %62 = arith.addf %61, %60 : vector<8x128xf32>
    %63 = arith.divf %61, %62 : vector<8x128xf32>
    %64 = vector.extract_strided_slice %51 {offsets = [0, 256], sizes = [8, 128], strides = [1, 1]} : vector<8x512xf32> to vector<8x128xf32>
    %65 = math.tanh %64 : vector<8x128xf32>
    %66 = vector.extract_strided_slice %51 {offsets = [0, 384], sizes = [8, 128], strides = [1, 1]} : vector<8x512xf32> to vector<8x128xf32>
    %67 = arith.negf %66 : vector<8x128xf32>
    %68 = math.exp %67 : vector<8x128xf32>
    %cst_27 = arith.constant 1.000000e+00 : f32
    %69 = vector.broadcast %cst_27 : f32 to vector<8x128xf32>
    %70 = arith.addf %69, %68 : vector<8x128xf32>
    %71 = arith.divf %69, %70 : vector<8x128xf32>
    %72 = arith.mulf %63, %9 : vector<8x128xf32>
    %73 = arith.mulf %57, %65 : vector<8x128xf32>
    %74 = arith.addf %72, %73 : vector<8x128xf32>
    %75 = math.tanh %74 : vector<8x128xf32>
    %76 = arith.mulf %71, %75 : vector<8x128xf32>
    %77 = vector.extract_strided_slice %76 {offsets = [0, 0], sizes = [1, 128], strides = [1, 1]} : vector<8x128xf32> to vector<1x128xf32>
    %78 = arith.index_cast %c0_i32 : i32 to index
    %c0_28 = arith.constant 0 : index
    %79 = vector.load %arg11[%78, %c0_28] : memref<8x128xf32, #tpu.memory_space<vmem>>, vector<1x128xf32>
    tpu.vector_store %arg11[%78, %c0_28], %77 {strides = array<i32>} : memref<8x128xf32, #tpu.memory_space<vmem>>, vector<1x128xf32>,
    %c1_i32 = arith.constant 1 : i32
    %80 = arith.index_cast %c1_i32 : i32 to index
    %c0_29 = arith.constant 0 : index
    %81 = vector.load %arg10[%80, %c0_29] : memref<8x512xf32, #tpu.memory_space<vmem>>, vector<1x512xf32>
    %82 = arith.truncf %41 : vector<8x128xf32> to vector<8x128xbf16>
    %c0_30 = arith.constant 0 : index
    %c0_31 = arith.constant 0 : index
    %83 = vector.load %arg2[%c0_30, %c0_31] : memref<128x512xbf16, #tpu.memory_space<vmem>>, vector<128x512xbf16>
    %cst_32 = arith.constant dense<0.000000e+00> : vector<8x512xf32>
    %84 = tpu.matmul %82, %83, %cst_32 {dimension_numbers = #tpu.dot_dimension_numbers<[1], [0], [0], [1], [0, 0, 1, 1], [], []>} : vector<8x128xbf16>, vector<128x512xbf16>, vector<8x512xf32> -> vector<8x512xf32>
    %85 = vector.broadcast %81 : vector<1x512xf32> to vector<8x512xf32>
    %86 = arith.addf %85, %84 : vector<8x512xf32>
    %87 = vector.extract_strided_slice %86 {offsets = [0, 0], sizes = [8, 128], strides = [1, 1]} : vector<8x512xf32> to vector<8x128xf32>
    %88 = arith.negf %87 : vector<8x128xf32>
    %89 = math.exp %88 : vector<8x128xf32>
    %cst_33 = arith.constant 1.000000e+00 : f32
    %90 = vector.broadcast %cst_33 : f32 to vector<8x128xf32>
    %91 = arith.addf %90, %89 : vector<8x128xf32>
    %92 = arith.divf %90, %91 : vector<8x128xf32>
    %93 = vector.extract_strided_slice %86 {offsets = [0, 128], sizes = [8, 128], strides = [1, 1]} : vector<8x512xf32> to vector<8x128xf32>
    %94 = arith.negf %93 : vector<8x128xf32>
    %95 = math.exp %94 : vector<8x128xf32>
    %cst_34 = arith.constant 1.000000e+00 : f32
    %96 = vector.broadcast %cst_34 : f32 to vector<8x128xf32>
    %97 = arith.addf %96, %95 : vector<8x128xf32>
    %98 = arith.divf %96, %97 : vector<8x128xf32>
    %99 = vector.extract_strided_slice %86 {offsets = [0, 256], sizes = [8, 128], strides = [1, 1]} : vector<8x512xf32> to vector<8x128xf32>
    %100 = math.tanh %99 : vector<8x128xf32>
    %101 = vector.extract_strided_slice %86 {offsets = [0, 384], sizes = [8, 128], strides = [1, 1]} : vector<8x512xf32> to vector<8x128xf32>
    %102 = arith.negf %101 : vector<8x128xf32>
    %103 = math.exp %102 : vector<8x128xf32>
    %cst_35 = arith.constant 1.000000e+00 : f32
    %104 = vector.broadcast %cst_35 : f32 to vector<8x128xf32>
    %105 = arith.addf %104, %103 : vector<8x128xf32>
    %106 = arith.divf %104, %105 : vector<8x128xf32>
    %107 = arith.mulf %98, %39 : vector<8x128xf32>
    %108 = arith.mulf %92, %100 : vector<8x128xf32>
    %109 = arith.addf %107, %108 : vector<8x128xf32>
    %110 = math.tanh %109 : vector<8x128xf32>
    %111 = arith.mulf %106, %110 : vector<8x128xf32>
    %112 = arith.truncf %111 : vector<8x128xf32> to vector<8x128xbf16>
    %c0_36 = arith.constant 0 : index
    %c0_37 = arith.constant 0 : index
    %113 = vector.load %arg9[%c0_36, %c0_37] : memref<256x512xbf16, #tpu.memory_space<vmem>>, vector<128x512xbf16>
    %cst_38 = arith.constant dense<0.000000e+00> : vector<8x512xf32>
    %114 = tpu.matmul %112, %113, %cst_38 {dimension_numbers = #tpu.dot_dimension_numbers<[1], [0], [0], [1], [0, 0, 1, 1], [], []>} : vector<8x128xbf16>, vector<128x512xbf16>, vector<8x512xf32> -> vector<8x512xf32>
    %115 = arith.truncf %76 : vector<8x128xf32> to vector<8x128xbf16>
    %c128_39 = arith.constant 128 : index
    %c0_40 = arith.constant 0 : index
    %116 = vector.load %arg9[%c128_39, %c0_40] : memref<256x512xbf16, #tpu.memory_space<vmem>>, vector<128x512xbf16>
    %cst_41 = arith.constant dense<0.000000e+00> : vector<8x512xf32>
    %117 = tpu.matmul %115, %116, %cst_41 {dimension_numbers = #tpu.dot_dimension_numbers<[1], [0], [0], [1], [0, 0, 1, 1], [], []>} : vector<8x128xbf16>, vector<128x512xbf16>, vector<8x512xf32> -> vector<8x512xf32>
    %118 = arith.addf %114, %117 : vector<8x512xf32>
    %c0_42 = arith.constant 0 : index
    %c0_43 = arith.constant 0 : index
    %119 = vector.load %arg5[%c0_42, %c0_43] : memref<1x512xf32, #tpu.memory_space<vmem>>, vector<1x512xf32>
    %120 = vector.broadcast %119 : vector<1x512xf32> to vector<8x512xf32>
    %121 = arith.addf %118, %120 : vector<8x512xf32>
    %122 = vector.extract_strided_slice %121 {offsets = [0, 0], sizes = [8, 128], strides = [1, 1]} : vector<8x512xf32> to vector<8x128xf32>
    %123 = arith.negf %122 : vector<8x128xf32>
    %124 = math.exp %123 : vector<8x128xf32>
    %cst_44 = arith.constant 1.000000e+00 : f32
    %125 = vector.broadcast %cst_44 : f32 to vector<8x128xf32>
    %126 = arith.addf %125, %124 : vector<8x128xf32>
    %127 = arith.divf %125, %126 : vector<8x128xf32>
    %128 = vector.extract_strided_slice %121 {offsets = [0, 128], sizes = [8, 128], strides = [1, 1]} : vector<8x512xf32> to vector<8x128xf32>
    %129 = arith.negf %128 : vector<8x128xf32>
    %130 = math.exp %129 : vector<8x128xf32>
    %cst_45 = arith.constant 1.000000e+00 : f32
    %131 = vector.broadcast %cst_45 : f32 to vector<8x128xf32>
    %132 = arith.addf %131, %130 : vector<8x128xf32>
    %133 = arith.divf %131, %132 : vector<8x128xf32>
    %134 = vector.extract_strided_slice %121 {offsets = [0, 256], sizes = [8, 128], strides = [1, 1]} : vector<8x512xf32> to vector<8x128xf32>
    %135 = math.tanh %134 : vector<8x128xf32>
    %136 = vector.extract_strided_slice %121 {offsets = [0, 384], sizes = [8, 128], strides = [1, 1]} : vector<8x512xf32> to vector<8x128xf32>
    %137 = arith.negf %136 : vector<8x128xf32>
    %138 = math.exp %137 : vector<8x128xf32>
    %cst_46 = arith.constant 1.000000e+00 : f32
    %139 = vector.broadcast %cst_46 : f32 to vector<8x128xf32>
    %140 = arith.addf %139, %138 : vector<8x128xf32>
    %141 = arith.divf %139, %140 : vector<8x128xf32>
    %142 = arith.mulf %133, %74 : vector<8x128xf32>
    %143 = arith.mulf %127, %135 : vector<8x128xf32>
    %144 = arith.addf %142, %143 : vector<8x128xf32>
    %145 = math.tanh %144 : vector<8x128xf32>
    %146 = arith.mulf %141, %145 : vector<8x128xf32>
    %147 = vector.extract_strided_slice %146 {offsets = [0, 0], sizes = [1, 128], strides = [1, 1]} : vector<8x128xf32> to vector<1x128xf32>
    %148 = arith.index_cast %c1_i32 : i32 to index
    %c0_47 = arith.constant 0 : index
    %149 = vector.load %arg11[%148, %c0_47] : memref<8x128xf32, #tpu.memory_space<vmem>>, vector<1x128xf32>
    tpu.vector_store %arg11[%148, %c0_47], %147 {strides = array<i32>} : memref<8x128xf32, #tpu.memory_space<vmem>>, vector<1x128xf32>,
    %c2_i32 = arith.constant 2 : i32
    %c0_48 = arith.constant 0 : index
    %c0_49 = arith.constant 0 : index
    %150 = vector.load %arg11[%c0_48, %c0_49] : memref<8x128xf32, #tpu.memory_space<vmem>>, vector<8x128xf32>
    %cst_50 = arith.constant 0.000000e+00 : f32
    %151 = vector.broadcast %cst_50 : f32 to vector<8x128xf32>
    %152 = arith.maximumf %150, %151 : vector<8x128xf32>
    %c0_51 = arith.constant 0 : index
    %c0_52 = arith.constant 0 : index
    %153 = vector.load %arg6[%c0_51, %c0_52] : memref<128x1xf32, #tpu.memory_space<vmem>>, vector<128x1xf32>
    %cst_53 = arith.constant dense<0.000000e+00> : vector<8x1xf32>
    %154 = tpu.matmul %152, %153, %cst_53 {dimension_numbers = #tpu.dot_dimension_numbers<[1], [0], [0], [1], [0, 0, 1, 1], [], []>} : vector<8x128xf32>, vector<128x1xf32>, vector<8x1xf32> -> vector<8x1xf32>
    %c0_54 = arith.constant 0 : index
    %c0_55 = arith.constant 0 : index
    %155 = vector.load %arg7[%c0_54, %c0_55] : memref<1x1xf32, #tpu.memory_space<vmem>>, vector<1x1xf32>
    %156 = vector.broadcast %155 : vector<1x1xf32> to vector<8x1xf32>
    %157 = arith.addf %154, %156 : vector<8x1xf32>
    %158 = vector.extract_strided_slice %157 {offsets = [0, 0], sizes = [2, 1], strides = [1, 1]} : vector<8x1xf32> to vector<2x1xf32>
    %159 = arith.negf %158 : vector<2x1xf32>
    %160 = math.exp %159 : vector<2x1xf32>
    %cst_56 = arith.constant 1.000000e+00 : f32
    %161 = vector.broadcast %cst_56 : f32 to vector<2x1xf32>
    %162 = arith.addf %161, %160 : vector<2x1xf32>
    %163 = arith.divf %161, %162 : vector<2x1xf32>
    %c0_57 = arith.constant 0 : index
    %c0_58 = arith.constant 0 : index
    %164 = vector.load %arg8[%c0_57, %c0_58] : memref<2x1xf32, #tpu.memory_space<vmem>>, vector<2x1xf32>
    tpu.vector_store %arg8[%c0_57, %c0_58], %163 {strides = array<i32>} : memref<2x1xf32, #tpu.memory_space<vmem>>, vector<2x1xf32>,
    return
  }
}

</mosaic_0001>

<llo_original>
// kernel: tpu_custom_call.1
$region0: #{tpu_custom_call.1}
  #allocation0 [shape = 'u32[]', space=smem, size = 0x4, offset = 0x4, fixed_abs, tag = 'smem constant byte address 0x4 - core index']
  #allocation1 [shape = 'u32[144,128]{1,0:T(1,128)}', space=vmem, size = 0x12000, scoped, tag = 'internal scratch']
  #allocation2 [shape = 'bf16[256,512]{1,0:T(16,128)(2,1)}', space=vmem, size = 0x40000, scoped, tag = 'scratch operand']
  #allocation3 [shape = 'f32[8,512]{1,0:T(8,128)}', space=vmem, size = 0x4000, scoped, tag = 'scratch operand']
  #allocation4 [shape = 'f32[8,128]{1,0:T(8,128)}', space=vmem, size = 0x1000, scoped, tag = 'scratch operand']
  #allocation5 [shape = 's32[1]{0}', space=sflag, size = 0x4, scoped, tag = 'scratch operand']
  #allocation6 [shape = 'f32[1,1]{1,0:T(1,128)S(1)}', space=vmem, size = 0x200, scoped, tag = 'scoped memory for tpu_custom_call.1']
  #allocation9 [shape = 's32[]', space=sflag, size = 0x4, offset = 0, fixed_abs, tag = 'sflag constant byte address 0x0 - dummy sync flag']
  %s0 = inlined_call_operand.vmem [shape: bf16[8,32], index: 0, kind: input, shape index: {}]
  %s1 = inlined_call_operand.vmem [shape: bf16[32,512], index: 1, kind: input, shape index: {}]
  %s2 = inlined_call_operand.hbm [shape: bf16[128,512], index: 2, kind: input, shape index: {}]
  %s3 = inlined_call_operand.vmem [shape: f32[1,512], index: 3, kind: input, shape index: {}]
  %s4 = inlined_call_operand.hbm [shape: bf16[256,512], index: 4, kind: input, shape index: {}]
  %s5 = inlined_call_operand.vmem [shape: f32[1,512], index: 5, kind: input, shape index: {}]
  %s6 = inlined_call_operand.vmem [shape: f32[128,1], index: 6, kind: input, shape index: {}]
  %s7 = inlined_call_operand.<no memory space> [shape: f32[1,1], index: 7, kind: input, shape index: {}]
  %s8 = inlined_call_operand.vmem [shape: f32[2,1], index: 8, kind: output, shape index: {}]
  %s9 = sld [smem:[#allocation0]]
  $region42: #{tpu_custom_call.1} parent=0
    _
  %s11 = ssub.s32 1, %s9
  %s12 = scalar_select 0, %s11, %s9
  %v13 = vstv %s7
  %14 = vst [vmem:[#allocation6] sm:$0x1] %v13
  $region1: #{tpu_custom_call.1} parent=0
    #allocation7 [shape = 'u8[131072]{0}', space=vmem, size = 0x20000, scoped, tag = 'input window, operand 2, single buffered']
    #allocation8 [shape = 's32[1]{0}', space=sflag, size = 0x4, scoped, tag = 'scoped memory for tpu_custom_call.1']
    #allocation10 [shape = 'u32[9]{0}', space=smem, size = 0x24, scoped, tag = 'DMA stride descriptor']
    %15 = vsyncpa [#allocation8], 0
    // Predicated region
    $region2: #{tpu_custom_call.1} parent=1 // pred_check
      _
    $region3: #{tpu_custom_call.1} parent=1 // pred_check_branch
      %17 = sbr.rel (0) target = $region5
    $region4: #{tpu_custom_call.1} parent=1 // pred_region
      _
    $region5: #{tpu_custom_call.1} parent=1 // pred_fallthru
      _
    // Predicated region
    $region6: #{tpu_custom_call.1} parent=1 // pred_check
      _
    $region7: #{tpu_custom_call.1} parent=1 // pred_check_branch
      %19 = sbr.rel (0) target = $region9
    $region8: #{tpu_custom_call.1} parent=1 // pred_region
      _
    $region9: #{tpu_custom_call.1} parent=1 // pred_fallthru
      _
    // Predicated region
    $region10: #{tpu_custom_call.1} parent=1 // pred_check
      _
    $region11: #{tpu_custom_call.1} parent=1 // pred_check_branch
      %21 = sbr.rel (0) target = $region13
    $region12: #{tpu_custom_call.1} parent=1 // pred_region
      %s23 = ssub.s32 4096, 4096
      %24 = vsyncadd [#allocation8], %s23
      %s25 = sshll.u32 [#allocation7], 4
      %s26 = int_to_ptr.vmem [resolvable:$true] %s25
      %31 = dma.hbm_to_vmem [thread:$0]  %s2, 4096, %s26, [#allocation8], 256, 256, 16
    $region13: #{tpu_custom_call.1} parent=1 // pred_fallthru
      _
    // Predicated region
    $region14: #{tpu_custom_call.1} parent=1 // pred_check
      _
    $region15: #{tpu_custom_call.1} parent=1 // pred_check_branch
      %33 = sbr.rel (0) target = $region17
    $region16: #{tpu_custom_call.1} parent=1 // pred_region
      _
    $region17: #{tpu_custom_call.1} parent=1 // pred_fallthru
      _
    // Predicated region
    $region18: #{tpu_custom_call.1} parent=1 // pred_check
      _
    $region19: #{tpu_custom_call.1} parent=1 // pred_check_branch
      %35 = sbr.rel (0) target = $region21
    $region20: #{tpu_custom_call.1} parent=1 // pred_region
      _
    $region21: #{tpu_custom_call.1} parent=1 // pred_fallthru
      _
    // Predicated region
    $region22: #{tpu_custom_call.1} parent=1 // pred_check
      _
    $region23: #{tpu_custom_call.1} parent=1 // pred_check_branch
      %37 = sbr.rel (0) target = $region25
    $region24: #{tpu_custom_call.1} parent=1 // pred_region
      _
    $region25: #{tpu_custom_call.1} parent=1 // pred_fallthru
      _
    // Predicated region
    $region26: #{tpu_custom_call.1} parent=1 // pred_check
      _
    $region27: #{tpu_custom_call.1} parent=1 // pred_check_branch
      %39 = sbr.rel (0) target = $region29
    $region28: #{tpu_custom_call.1} parent=1 // pred_region
      _
    $region29: #{tpu_custom_call.1} parent=1 // pred_fallthru
      _
    // Predicated region
    $region30: #{tpu_custom_call.1} parent=1 // pred_check
      _
    $region31: #{tpu_custom_call.1} parent=1 // pred_check_branch
      %41 = sbr.rel (0) target = $region33
    $region32: #{tpu_custom_call.1} parent=1 // pred_region
      %42 = dma.done [#allocation8], 4096
    $region33: #{tpu_custom_call.1} parent=1 // pred_fallthru
      _
    %s45 = sshll.u32 1, 14
    %s46 = sxor.u32 4294967295, %s45
    %s48 = sld [smem:[#allocation0]]
    %s49 = sadd.s32 2, %s48
    %s51 = sshll.u32 7, 26
    %s52 = sxor.u32 4294967295, %s51
    %s53 = sand.u32 0, %s52
    %s54 = sshll.u32 %s49, 26
    %s55 = sor.u32 %s53, %s54
    %s56 = sshll.u32 [#allocation2], 4
    %s57 = int_to_ptr.vmem [resolvable:$true] %s56
    %60 = sst [smem:[#allocation10]] 512
    %s61 = scalar_lea.smem [#allocation10], 1
    %62 = sst [smem:[%s61]] 512
    %s63 = scalar_lea.smem [#allocation10], 2
    %64 = sst [smem:[%s63]] 4
    %s65 = scalar_lea.smem [#allocation10], 3
    %66 = sst [smem:[%s65]] 64
    %s67 = scalar_lea.smem [#allocation10], 4
    %68 = sst [smem:[%s67]] 128
    %s69 = scalar_lea.smem [#allocation10], 5
    %70 = sst [smem:[%s69]] 2
    %s71 = scalar_lea.smem [#allocation10], 6
    %72 = sst [smem:[%s71]] 256
    %s73 = scalar_lea.smem [#allocation10], 7
    %74 = sst [smem:[%s73]] 64
    %s75 = scalar_lea.smem [#allocation10], 8
    %76 = sst [smem:[%s75]] 4
    %78 = dma.general %s4, 8192, %s57, [#allocation5], [#allocation9], [#allocation10], %s55, 0
    %79 = vst [vmem:[#allocation4] sm:$0xff] 0.0
    %v80 = vld [vmem:[%s0] sm:$0xf]
    %v81 = vld [vmem:[%s1] sm:$0xff]
    %v82 = vld [vmem:[%s1 + $0x8] sm:$0xff]
    %v83 = vld [vmem:[%s1 + $0x10] sm:$0xff]
    %v84 = vld [vmem:[%s1 + $0x18] sm:$0xff]
    %v85 = vld [vmem:[%s1 + $0x20] sm:$0xff]
    %v86 = vld [vmem:[%s1 + $0x28] sm:$0xff]
    %v87 = vld [vmem:[%s1 + $0x30] sm:$0xff]
    %v88 = vld [vmem:[%s1 + $0x38] sm:$0xff]
    %v89 = vld [vmem:[%s3] sm:$0xf]
    %v91 = vlaneseq
    %v92 = vshrl.u32 %v91, 7
    %v93 = vsub.s32 0, %v92
    %v94 = vrot.slane %v89, %v93
    %v95 = vlaneseq
    %v96 = vshrl.u32 %v95, 7
    %v97 = vsub.s32 1, %v96
    %v98 = vrot.slane %v89, %v97
    %v99 = vlaneseq
    %v100 = vshrl.u32 %v99, 7
    %v101 = vsub.s32 2, %v100
    %v102 = vrot.slane %v89, %v101
    %v103 = vlaneseq
    %v104 = vshrl.u32 %v103, 7
    %v105 = vsub.s32 3, %v104
    %v106 = vrot.slane %v89, %v105
    %v119 = vunpack.c.l.b16 %v81
    %v120 = vunpack.c.h.b16 %v81
    %v121 = vunpack.c.l.b16 %v82
    %v122 = vunpack.c.h.b16 %v82
    %v123 = vunpack.c.l.b16 %v83
    %v124 = vunpack.c.h.b16 %v83
    %v125 = vunpack.c.l.b16 %v84
    %v126 = vunpack.c.h.b16 %v84
    %v127 = vunpack.c.l.b16 %v85
    %v128 = vunpack.c.h.b16 %v85
    %v129 = vunpack.c.l.b16 %v86
    %v130 = vunpack.c.h.b16 %v86
    %v131 = vunpack.c.l.b16 %v87
    %v132 = vunpack.c.h.b16 %v87
    %v133 = vunpack.c.l.b16 %v88
    %v134 = vunpack.c.h.b16 %v88
    %v135 = vpack.c.b16 %v123, %v119
    %v136 = vpack.c.b16 %v124, %v120
    %v137 = vpack.c.b16 %v125, %v121
    %v138 = vpack.c.b16 %v126, %v122
    %v139 = vpack.c.b16 %v131, %v127
    %v140 = vpack.c.b16 %v132, %v128
    %v141 = vpack.c.b16 %v133, %v129
    %v142 = vpack.c.b16 %v134, %v130
    %vm151 = vcmask 261120
    %v153 = vsel %vm151, %v80, 0
    %155 = vmatprep.subr.bf16.mxu0 %v136
    %156 = vmatpush1.bf16.msra.mxu0 %v135
    %157 = vmatprep.subr.bf16.mxu0 %v140
    %158 = vmatpush1.bf16.msra.mxu0 %v139
    %159 = vmatprep.subr.bf16.mxu0 0
    %160 = vmatpush1.bf16.msra.mxu0 0
    %161 = vmatprep.subr.bf16.mxu0 0
    %162 = vmatpush1.bf16.msra.mxu0 0
    %163 = vmatprep.subr.bf16.mxu0 0
    %164 = vmatpush1.bf16.msra.mxu0 0
    %165 = vmatprep.subr.bf16.mxu0 0
    %166 = vmatpush1.bf16.msra.mxu0 0
    %167 = vmatprep.subr.bf16.mxu0 0
    %168 = vmatpush1.bf16.msra.mxu0 0
    %169 = vmatprep.subr.bf16.mxu0 0
    %170 = vmatpush1.bf16.msra.mxu0 0
    %171 = vmatprep.subr.bf16.mxu0 0
    %172 = vmatpush1.bf16.msra.mxu0 0
    %173 = vmatprep.subr.bf16.mxu0 0
    %174 = vmatpush1.bf16.msra.mxu0 0
    %175 = vmatprep.subr.bf16.mxu0 0
    %176 = vmatpush1.bf16.msra.mxu0 0
    %177 = vmatprep.subr.bf16.mxu0 0
    %178 = vmatpush1.bf16.msra.mxu0 0
    %179 = vmatprep.subr.bf16.mxu0 0
    %180 = vmatpush1.bf16.msra.mxu0 0
    %181 = vmatprep.subr.bf16.mxu0 0
    %182 = vmatpush1.bf16.msra.mxu0 0
    %183 = vmatprep.subr.bf16.mxu0 0
    %184 = vmatpush1.bf16.msra.mxu0 0
    %185 = vmatprep.subr.bf16.mxu0 0
    %186 = vmatpush1.bf16.msra.mxu0 0
    %187 = vmatprep.mubr.bf16.mxu0 0
    %188 = vmatmul.mubr.bf16.gmra.mrb[0].mxu0 %v153
    %v189 = vpop.f32.mrb[0].mxu0
    %v190 = vadd.f32 %v94, %v189
    %v191 = vpop.f32.mrb[0].mxu0
    %v192 = vadd.f32 %v98, %v191
    %v193 = vpop.f32.mrb[0].mxu0
    %v194 = vpop.f32.mrb[0].mxu0
    %195 = vdwg.mxu0
    %196 = vmatprep.subr.bf16.mxu0 %v138
    %197 = vmatpush1.bf16.msra.mxu0 %v137
    %198 = vmatprep.subr.bf16.mxu0 %v142
    %199 = vmatpush1.bf16.msra.mxu0 %v141
    %200 = vmatprep.subr.bf16.mxu0 0
    %201 = vmatpush1.bf16.msra.mxu0 0
    %202 = vmatprep.subr.bf16.mxu0 0
    %203 = vmatpush1.bf16.msra.mxu0 0
    %204 = vmatprep.subr.bf16.mxu0 0
    %205 = vmatpush1.bf16.msra.mxu0 0
    %206 = vmatprep.subr.bf16.mxu0 0
    %207 = vmatpush1.bf16.msra.mxu0 0
    %208 = vmatprep.subr.bf16.mxu0 0
    %209 = vmatpush1.bf16.msra.mxu0 0
    %210 = vmatprep.subr.bf16.mxu0 0
    %211 = vmatpush1.bf16.msra.mxu0 0
    %212 = vmatprep.subr.bf16.mxu0 0
    %213 = vmatpush1.bf16.msra.mxu0 0
    %214 = vmatprep.subr.bf16.mxu0 0
    %215 = vmatpush1.bf16.msra.mxu0 0
    %216 = vmatprep.subr.bf16.mxu0 0
    %217 = vmatpush1.bf16.msra.mxu0 0
    %218 = vmatprep.subr.bf16.mxu0 0
    %219 = vmatpush1.bf16.msra.mxu0 0
    %220 = vmatprep.subr.bf16.mxu0 0
    %221 = vmatpush1.bf16.msra.mxu0 0
    %222 = vmatprep.subr.bf16.mxu0 0
    %223 = vmatpush1.bf16.msra.mxu0 0
    %224 = vmatprep.subr.bf16.mxu0 0
    %225 = vmatpush1.bf16.msra.mxu0 0
    %226 = vmatprep.subr.bf16.mxu0 0
    %227 = vmatpush1.bf16.msra.mxu0 0
    %228 = vmatprep.mubr.bf16.mxu0 0
    %229 = vmatmul.mubr.bf16.gmra.mrb[0].mxu0 %v153
    %v230 = vpop.f32.mrb[0].mxu0
    %v231 = vadd.f32 %v102, %v230
    %v232 = vpop.f32.mrb[0].mxu0
    %v233 = vadd.f32 %v106, %v232
    %v234 = vpop.f32.mrb[0].mxu0
    %v235 = vpop.f32.mrb[0].mxu0
    %236 = vdwg.mxu0
    %237 = vst [vmem:[#allocation3] sm:$0xff] %v190
    %238 = vst [vmem:[#allocation3 + $0x8] sm:$0xff] %v192
    %239 = vst [vmem:[#allocation3 + $0x10] sm:$0xff] %v231
    %240 = vst [vmem:[#allocation3 + $0x18] sm:$0xff] %v233
    %s241 = smul.u32 4, 32
    %s242 = smul.u32 %s241, 4
    %s243 = sshll.u32 %s242, 4
    %244 = dma.done [#allocation5], %s243
    %v245 = vld [vmem:[#allocation3] ss:$8 sm:$0xf]
    %v246 = vld [vmem:[#allocation7] sm:$0xff]
    %v247 = vld [vmem:[#allocation7 + $0x8] sm:$0xff]
    %v248 = vld [vmem:[#allocation7 + $0x10] sm:$0xff]
    %v249 = vld [vmem:[#allocation7 + $0x18] sm:$0xff]
    %v250 = vld [vmem:[#allocation7 + $0x20] sm:$0xff]
    %v251 = vld [vmem:[#allocation7 + $0x28] sm:$0xff]
    %v252 = vld [vmem:[#allocation7 + $0x30] sm:$0xff]
    %v253 = vld [vmem:[#allocation7 + $0x38] sm:$0xff]
    %v254 = vld [vmem:[#allocation7 + $0x40] sm:$0xff]
    %v255 = vld [vmem:[#allocation7 + $0x48] sm:$0xff]
    %v256 = vld [vmem:[#allocation7 + $0x50] sm:$0xff]
    %v257 = vld [vmem:[#allocation7 + $0x58] sm:$0xff]
    %v258 = vld [vmem:[#allocation7 + $0x60] sm:$0xff]
    %v259 = vld [vmem:[#allocation7 + $0x68] sm:$0xff]
    %v260 = vld [vmem:[#allocation7 + $0x70] sm:$0xff]
    %v261 = vld [vmem:[#allocation7 + $0x78] sm:$0xff]
    %v262 = vld [vmem:[#allocation7 + $0x80] sm:$0xff]
    %v263 = vld [vmem:[#allocation7 + $0x88] sm:$0xff]
    %v264 = vld [vmem:[#allocation7 + $0x90] sm:$0xff]
    %v265 = vld [vmem:[#allocation7 + $0x98] sm:$0xff]
    %v266 = vld [vmem:[#allocation7 + $0xa0] sm:$0xff]
    %v267 = vld [vmem:[#allocation7 + $0xa8] sm:$0xff]
    %v268 = vld [vmem:[#allocation7 + $0xb0] sm:$0xff]
    %v269 = vld [vmem:[#allocation7 + $0xb8] sm:$0xff]
    %v270 = vld [vmem:[#allocation7 + $0xc0] sm:$0xff]
    %v271 = vld [vmem:[#allocation7 + $0xc8] sm:$0xff]
    %v272 = vld [vmem:[#allocation7 + $0xd0] sm:$0xff]
    %v273 = vld [vmem:[#allocation7 + $0xd8] sm:$0xff]
    %v274 = vld [vmem:[#allocation7 + $0xe0] sm:$0xff]
    %v275 = vld [vmem:[#allocation7 + $0xe8] sm:$0xff]
    %v276 = vld [vmem:[#allocation7 + $0xf0] sm:$0xff]
    %v277 = vld [vmem:[#allocation7 + $0xf8] sm:$0xff]
    %v310 = vunpack.c.l.b16 %v246
    %v311 = vunpack.c.h.b16 %v246
    %v312 = vunpack.c.l.b16 %v247
    %v313 = vunpack.c.h.b16 %v247
    %v314 = vunpack.c.l.b16 %v248
    %v315 = vunpack.c.h.b16 %v248
    %v316 = vunpack.c.l.b16 %v249
    %v317 = vunpack.c.h.b16 %v249
    %v318 = vunpack.c.l.b16 %v250
    %v319 = vunpack.c.h.b16 %v250
    %v320 = vunpack.c.l.b16 %v251
    %v321 = vunpack.c.h.b16 %v251
    %v322 = vunpack.c.l.b16 %v252
    %v323 = vunpack.c.h.b16 %v252
    %v324 = vunpack.c.l.b16 %v253
    %v325 = vunpack.c.h.b16 %v253
    %v326 = vunpack.c.l.b16 %v254
    %v327 = vunpack.c.h.b16 %v254
    %v328 = vunpack.c.l.b16 %v255
    %v329 = vunpack.c.h.b16 %v255
    %v330 = vunpack.c.l.b16 %v256
    %v331 = vunpack.c.h.b16 %v256
    %v332 = vunpack.c.l.b16 %v257
    %v333 = vunpack.c.h.b16 %v257
    %v334 = vunpack.c.l.b16 %v258
    %v335 = vunpack.c.h.b16 %v258
    %v336 = vunpack.c.l.b16 %v259
    %v337 = vunpack.c.h.b16 %v259
    %v338 = vunpack.c.l.b16 %v260
    %v339 = vunpack.c.h.b16 %v260
    %v340 = vunpack.c.l.b16 %v261
    %v341 = vunpack.c.h.b16 %v261
    %v342 = vunpack.c.l.b16 %v262
    %v343 = vunpack.c.h.b16 %v262
    %v344 = vunpack.c.l.b16 %v263
    %v345 = vunpack.c.h.b16 %v263
    %v346 = vunpack.c.l.b16 %v264
    %v347 = vunpack.c.h.b16 %v264
    %v348 = vunpack.c.l.b16 %v265
    %v349 = vunpack.c.h.b16 %v265
    %v350 = vunpack.c.l.b16 %v266
    %v351 = vunpack.c.h.b16 %v266
    %v352 = vunpack.c.l.b16 %v267
    %v353 = vunpack.c.h.b16 %v267
    %v354 = vunpack.c.l.b16 %v268
    %v355 = vunpack.c.h.b16 %v268
    %v356 = vunpack.c.l.b16 %v269
    %v357 = vunpack.c.h.b16 %v269
    %v358 = vunpack.c.l.b16 %v270
    %v359 = vunpack.c.h.b16 %v270
    %v360 = vunpack.c.l.b16 %v271
    %v361 = vunpack.c.h.b16 %v271
    %v362 = vunpack.c.l.b16 %v272
    %v363 = vunpack.c.h.b16 %v272
    %v364 = vunpack.c.l.b16 %v273
    %v365 = vunpack.c.h.b16 %v273
    %v366 = vunpack.c.l.b16 %v274
    %v367 = vunpack.c.h.b16 %v274
    %v368 = vunpack.c.l.b16 %v275
    %v369 = vunpack.c.h.b16 %v275
    %v370 = vunpack.c.l.b16 %v276
    %v371 = vunpack.c.h.b16 %v276
    %v372 = vunpack.c.l.b16 %v277
    %v373 = vunpack.c.h.b16 %v277
    %v374 = vpack.c.b16 %v314, %v310
    %v375 = vpack.c.b16 %v315, %v311
    %v376 = vpack.c.b16 %v316, %v312
    %v377 = vpack.c.b16 %v317, %v313
    %v378 = vpack.c.b16 %v322, %v318
    %v379 = vpack.c.b16 %v323, %v319
    %v380 = vpack.c.b16 %v324, %v320
    %v381 = vpack.c.b16 %v325, %v321
    %v382 = vpack.c.b16 %v330, %v326
    %v383 = vpack.c.b16 %v331, %v327
    %v384 = vpack.c.b16 %v332, %v328
    %v385 = vpack.c.b16 %v333, %v329
    %v386 = vpack.c.b16 %v338, %v334
    %v387 = vpack.c.b16 %v339, %v335
    %v388 = vpack.c.b16 %v340, %v336
    %v389 = vpack.c.b16 %v341, %v337
    %v390 = vpack.c.b16 %v346, %v342
    %v391 = vpack.c.b16 %v347, %v343
    %v392 = vpack.c.b16 %v348, %v344
    %v393 = vpack.c.b16 %v349, %v345
    %v394 = vpack.c.b16 %v354, %v350
    %v395 = vpack.c.b16 %v355, %v351
    %v396 = vpack.c.b16 %v356, %v352
    %v397 = vpack.c.b16 %v357, %v353
    %v398 = vpack.c.b16 %v362, %v358
    %v399 = vpack.c.b16 %v363, %v359
    %v400 = vpack.c.b16 %v364, %v360
    %v401 = vpack.c.b16 %v365, %v361
    %v402 = vpack.c.b16 %v370, %v366
    %v403 = vpack.c.b16 %v371, %v367
    %v404 = vpack.c.b16 %v372, %v368
    %v405 = vpack.c.b16 %v373, %v369
    %438 = vmatprep.subr.bf16.mxu0 %v375
    %439 = vmatpush1.bf16.msra.mxu0 %v374
    %440 = vmatprep.subr.bf16.mxu0 %v379
    %441 = vmatpush1.bf16.msra.mxu0 %v378
    %442 = vmatprep.subr.bf16.mxu0 %v383
    %443 = vmatpush1.bf16.msra.mxu0 %v382
    %444 = vmatprep.subr.bf16.mxu0 %v387
    %445 = vmatpush1.bf16.msra.mxu0 %v386
    %446 = vmatprep.subr.bf16.mxu0 %v391
    %447 = vmatpush1.bf16.msra.mxu0 %v390
    %448 = vmatprep.subr.bf16.mxu0 %v395
    %449 = vmatpush1.bf16.msra.mxu0 %v394
    %450 = vmatprep.subr.bf16.mxu0 %v399
    %451 = vmatpush1.bf16.msra.mxu0 %v398
    %452 = vmatprep.subr.bf16.mxu0 %v403
    %453 = vmatpush1.bf16.msra.mxu0 %v402
    %454 = vmatprep.subr.bf16.mxu0 0
    %455 = vmatpush1.bf16.msra.mxu0 0
    %456 = vmatprep.subr.bf16.mxu0 0
    %457 = vmatpush1.bf16.msra.mxu0 0
    %458 = vmatprep.subr.bf16.mxu0 0
    %459 = vmatpush1.bf16.msra.mxu0 0
    %460 = vmatprep.subr.bf16.mxu0 0
    %461 = vmatpush1.bf16.msra.mxu0 0
    %462 = vmatprep.subr.bf16.mxu0 0
    %463 = vmatpush1.bf16.msra.mxu0 0
    %464 = vmatprep.subr.bf16.mxu0 0
    %465 = vmatpush1.bf16.msra.mxu0 0
    %466 = vmatprep.subr.bf16.mxu0 0
    %467 = vmatpush1.bf16.msra.mxu0 0
    %468 = vmatprep.subr.bf16.mxu0 0
    %469 = vmatpush1.bf16.msra.mxu0 0
    %470 = vmatprep.mubr.bf16.mxu0 0
    %471 = vmatmul.mubr.bf16.gmra.mrb[0].mxu0 0
    %v472 = vpop.f32.mrb[0].mxu0
    %v473 = vadd.f32 0.0, %v472
    %v474 = vpop.f32.mrb[0].mxu0
    %v475 = vadd.f32 0.0, %v474
    %v476 = vpop.f32.mrb[0].mxu0
    %v477 = vpop.f32.mrb[0].mxu0
    %478 = vdwg.mxu0
    %479 = vmatprep.subr.bf16.mxu0 %v377
    %480 = vmatpush1.bf16.msra.mxu0 %v376
    %481 = vmatprep.subr.bf16.mxu0 %v381
    %482 = vmatpush1.bf16.msra.mxu0 %v380
    %483 = vmatprep.subr.bf16.mxu0 %v385
    %484 = vmatpush1.bf16.msra.mxu0 %v384
    %485 = vmatprep.subr.bf16.mxu0 %v389
    %486 = vmatpush1.bf16.msra.mxu0 %v388
    %487 = vmatprep.subr.bf16.mxu0 %v393
    %488 = vmatpush1.bf16.msra.mxu0 %v392
    %489 = vmatprep.subr.bf16.mxu0 %v397
    %490 = vmatpush1.bf16.msra.mxu0 %v396
    %491 = vmatprep.subr.bf16.mxu0 %v401
    %492 = vmatpush1.bf16.msra.mxu0 %v400
    %493 = vmatprep.subr.bf16.mxu0 %v405
    %494 = vmatpush1.bf16.msra.mxu0 %v404
    %495 = vmatprep.subr.bf16.mxu0 0
    %496 = vmatpush1.bf16.msra.mxu0 0
    %497 = vmatprep.subr.bf16.mxu0 0
    %498 = vmatpush1.bf16.msra.mxu0 0
    %499 = vmatprep.subr.bf16.mxu0 0
    %500 = vmatpush1.bf16.msra.mxu0 0
    %501 = vmatprep.subr.bf16.mxu0 0
    %502 = vmatpush1.bf16.msra.mxu0 0
    %503 = vmatprep.subr.bf16.mxu0 0
    %504 = vmatpush1.bf16.msra.mxu0 0
    %505 = vmatprep.subr.bf16.mxu0 0
    %506 = vmatpush1.bf16.msra.mxu0 0
    %507 = vmatprep.subr.bf16.mxu0 0
    %508 = vmatpush1.bf16.msra.mxu0 0
    %509 = vmatprep.subr.bf16.mxu0 0
    %510 = vmatpush1.bf16.msra.mxu0 0
    %511 = vmatprep.mubr.bf16.mxu0 0
    %512 = vmatmul.mubr.bf16.gmra.mrb[0].mxu0 0
    %v513 = vpop.f32.mrb[0].mxu0
    %v514 = vadd.f32 0.0, %v513
    %v515 = vpop.f32.mrb[0].mxu0
    %v516 = vadd.f32 0.0, %v515
    %v517 = vpop.f32.mrb[0].mxu0
    %v518 = vpop.f32.mrb[0].mxu0
    %519 = vdwg.mxu0
    %v521 = vlaneseq
    %v522 = vshrl.u32 %v521, 7
    %v523 = vsub.s32 0, %v522
    %v524 = vrot.slane %v245, %v523
    %v525 = vlaneseq
    %v526 = vshrl.u32 %v525, 7
    %v527 = vsub.s32 1, %v526
    %v528 = vrot.slane %v245, %v527
    %v529 = vlaneseq
    %v530 = vshrl.u32 %v529, 7
    %v531 = vsub.s32 2, %v530
    %v532 = vrot.slane %v245, %v531
    %v533 = vlaneseq
    %v534 = vshrl.u32 %v533, 7
    %v535 = vsub.s32 3, %v534
    %v536 = vrot.slane %v245, %v535
    %v541 = vadd.f32 %v524, %v473
    %v542 = vadd.f32 %v528, %v475
    %v543 = vadd.f32 %v532, %v514
    %v544 = vadd.f32 %v536, %v516
    %v545 = vxor.u32 %v541, 2147483648
    %v546 = vmul.f32 %v545, 1.442695
    %v547 = vpow.pop %v546
    %v548 = vadd.f32 %v547, 1.0
    %v549 = vrcp.pop %v548
    %v550 = vmul.f32 1.0, %v549
    %v551 = vxor.u32 %v542, 2147483648
    %v552 = vmul.f32 %v551, 1.442695
    %v553 = vpow.pop %v552
    %v554 = vadd.f32 %v553, 1.0
    %v555 = vrcp.pop %v554
    %v556 = vmul.f32 1.0, %v555
    %v557 = vtanh.pop %v543
    %v558 = vxor.u32 %v544, 2147483648
    %v559 = vmul.f32 %v558, 1.442695
    %v560 = vpow.pop %v559
    %v561 = vadd.f32 %v560, 1.0
    %v562 = vrcp.pop %v561
    %v563 = vmul.f32 1.0, %v562
    %v564 = vmul.f32 %v556, 0.0
    %v565 = vmul.f32 %v550, %v557
    %v566 = vadd.f32 %v564, %v565
    %v567 = vtanh.pop %v566
    %v568 = vmul.f32 %v563, %v567
    %v569 = vpack.c.bf16 %v568, %v568
    %v570 = vld [vmem:[#allocation2] sm:$0xff]
    %v571 = vld [vmem:[#allocation2 + $0x8] sm:$0xff]
    %v572 = vld [vmem:[#allocation2 + $0x10] sm:$0xff]
    %v573 = vld [vmem:[#allocation2 + $0x18] sm:$0xff]
    %v574 = vld [vmem:[#allocation2 + $0x20] sm:$0xff]
    %v575 = vld [vmem:[#allocation2 + $0x28] sm:$0xff]
    %v576 = vld [vmem:[#allocation2 + $0x30] sm:$0xff]
    %v577 = vld [vmem:[#allocation2 + $0x38] sm:$0xff]
    %v578 = vld [vmem:[#allocation2 + $0x40] sm:$0xff]
    %v579 = vld [vmem:[#allocation2 + $0x48] sm:$0xff]
    %v580 = vld [vmem:[#allocation2 + $0x50] sm:$0xff]
    %v581 = vld [vmem:[#allocation2 + $0x58] sm:$0xff]
    %v582 = vld [vmem:[#allocation2 + $0x60] sm:$0xff]
    %v583 = vld [vmem:[#allocation2 + $0x68] sm:$0xff]
    %v584 = vld [vmem:[#allocation2 + $0x70] sm:$0xff]
    %v585 = vld [vmem:[#allocation2 + $0x78] sm:$0xff]
    %v586 = vld [vmem:[#allocation2 + $0x80] sm:$0xff]
    %v587 = vld [vmem:[#allocation2 + $0x88] sm:$0xff]
    %v588 = vld [vmem:[#allocation2 + $0x90] sm:$0xff]
    %v589 = vld [vmem:[#allocation2 + $0x98] sm:$0xff]
    %v590 = vld [vmem:[#allocation2 + $0xa0] sm:$0xff]
    %v591 = vld [vmem:[#allocation2 + $0xa8] sm:$0xff]
    %v592 = vld [vmem:[#allocation2 + $0xb0] sm:$0xff]
    %v593 = vld [vmem:[#allocation2 + $0xb8] sm:$0xff]
    %v594 = vld [vmem:[#allocation2 + $0xc0] sm:$0xff]
    %v595 = vld [vmem:[#allocation2 + $0xc8] sm:$0xff]
    %v596 = vld [vmem:[#allocation2 + $0xd0] sm:$0xff]
    %v597 = vld [vmem:[#allocation2 + $0xd8] sm:$0xff]
    %v598 = vld [vmem:[#allocation2 + $0xe0] sm:$0xff]
    %v599 = vld [vmem:[#allocation2 + $0xe8] sm:$0xff]
    %v600 = vld [vmem:[#allocation2 + $0xf0] sm:$0xff]
    %v601 = vld [vmem:[#allocation2 + $0xf8] sm:$0xff]
    %v602 = vld [vmem:[#allocation2 + $0x100] sm:$0xff]
    %v603 = vld [vmem:[#allocation2 + $0x108] sm:$0xff]
    %v604 = vld [vmem:[#allocation2 + $0x110] sm:$0xff]
    %v605 = vld [vmem:[#allocation2 + $0x118] sm:$0xff]
    %v606 = vld [vmem:[#allocation2 + $0x120] sm:$0xff]
    %v607 = vld [vmem:[#allocation2 + $0x128] sm:$0xff]
    %v608 = vld [vmem:[#allocation2 + $0x130] sm:$0xff]
    %v609 = vld [vmem:[#allocation2 + $0x138] sm:$0xff]
    %v610 = vld [vmem:[#allocation2 + $0x140] sm:$0xff]
    %v611 = vld [vmem:[#allocation2 + $0x148] sm:$0xff]
    %v612 = vld [vmem:[#allocation2 + $0x150] sm:$0xff]
    %v613 = vld [vmem:[#allocation2 + $0x158] sm:$0xff]
    %v614 = vld [vmem:[#allocation2 + $0x160] sm:$0xff]
    %v615 = vld [vmem:[#allocation2 + $0x168] sm:$0xff]
    %v616 = vld [vmem:[#allocation2 + $0x170] sm:$0xff]
    %v617 = vld [vmem:[#allocation2 + $0x178] sm:$0xff]
    %v618 = vld [vmem:[#allocation2 + $0x180] sm:$0xff]
    %v619 = vld [vmem:[#allocation2 + $0x188] sm:$0xff]
    %v620 = vld [vmem:[#allocation2 + $0x190] sm:$0xff]
    %v621 = vld [vmem:[#allocation2 + $0x198] sm:$0xff]
    %v622 = vld [vmem:[#allocation2 + $0x1a0] sm:$0xff]
    %v623 = vld [vmem:[#allocation2 + $0x1a8] sm:$0xff]
    %v624 = vld [vmem:[#allocation2 + $0x1b0] sm:$0xff]
    %v625 = vld [vmem:[#allocation2 + $0x1b8] sm:$0xff]
    %v626 = vld [vmem:[#allocation2 + $0x1c0] sm:$0xff]
    %v627 = vld [vmem:[#allocation2 + $0x1c8] sm:$0xff]
    %v628 = vld [vmem:[#allocation2 + $0x1d0] sm:$0xff]
    %v629 = vld [vmem:[#allocation2 + $0x1d8] sm:$0xff]
    %v630 = vld [vmem:[#allocation2 + $0x1e0] sm:$0xff]
    %v631 = vld [vmem:[#allocation2 + $0x1e8] sm:$0xff]
    %v632 = vld [vmem:[#allocation2 + $0x1f0] sm:$0xff]
    %v633 = vld [vmem:[#allocation2 + $0x1f8] sm:$0xff]
    %634 = vmatprep.subr.bf16.mxu0 %v603
    %635 = vmatpush1.bf16.msra.mxu0 %v602
    %636 = vmatprep.subr.bf16.mxu0 %v607
    %637 = vmatpush1.bf16.msra.mxu0 %v606
    %638 = vmatprep.subr.bf16.mxu0 %v611
    %639 = vmatpush1.bf16.msra.mxu0 %v610
    %640 = vmatprep.subr.bf16.mxu0 %v615
    %641 = vmatpush1.bf16.msra.mxu0 %v614
    %642 = vmatprep.subr.bf16.mxu0 %v619
    %643 = vmatpush1.bf16.msra.mxu0 %v618
    %644 = vmatprep.subr.bf16.mxu0 %v623
    %645 = vmatpush1.bf16.msra.mxu0 %v622
    %646 = vmatprep.subr.bf16.mxu0 %v627
    %647 = vmatpush1.bf16.msra.mxu0 %v626
    %648 = vmatprep.subr.bf16.mxu0 %v631
    %649 = vmatpush1.bf16.msra.mxu0 %v630
    %650 = vmatprep.subr.bf16.mxu0 0
    %651 = vmatpush1.bf16.msra.mxu0 0
    %652 = vmatprep.subr.bf16.mxu0 0
    %653 = vmatpush1.bf16.msra.mxu0 0
    %654 = vmatprep.subr.bf16.mxu0 0
    %655 = vmatpush1.bf16.msra.mxu0 0
    %656 = vmatprep.subr.bf16.mxu0 0
    %657 = vmatpush1.bf16.msra.mxu0 0
    %658 = vmatprep.subr.bf16.mxu0 0
    %659 = vmatpush1.bf16.msra.mxu0 0
    %660 = vmatprep.subr.bf16.mxu0 0
    %661 = vmatpush1.bf16.msra.mxu0 0
    %662 = vmatprep.subr.bf16.mxu0 0
    %663 = vmatpush1.bf16.msra.mxu0 0
    %664 = vmatprep.subr.bf16.mxu0 0
    %665 = vmatpush1.bf16.msra.mxu0 0
    %666 = vmatprep.mubr.bf16.mxu0 0
    %667 = vmatmul.mubr.bf16.gmra.mrb[0].mxu0 0
    %v668 = vpop.f32.mrb[0].mxu0
    %v669 = vadd.f32 0.0, %v668
    %v670 = vpop.f32.mrb[0].mxu0
    %v671 = vadd.f32 0.0, %v670
    %v672 = vpop.f32.mrb[0].mxu0
    %v673 = vpop.f32.mrb[0].mxu0
    %674 = vdwg.mxu0
    %675 = vmatprep.subr.bf16.mxu0 %v605
    %676 = vmatpush1.bf16.msra.mxu0 %v604
    %677 = vmatprep.subr.bf16.mxu0 %v609
    %678 = vmatpush1.bf16.msra.mxu0 %v608
    %679 = vmatprep.subr.bf16.mxu0 %v613
    %680 = vmatpush1.bf16.msra.mxu0 %v612
    %681 = vmatprep.subr.bf16.mxu0 %v617
    %682 = vmatpush1.bf16.msra.mxu0 %v616
    %683 = vmatprep.subr.bf16.mxu0 %v621
    %684 = vmatpush1.bf16.msra.mxu0 %v620
    %685 = vmatprep.subr.bf16.mxu0 %v625
    %686 = vmatpush1.bf16.msra.mxu0 %v624
    %687 = vmatprep.subr.bf16.mxu0 %v629
    %688 = vmatpush1.bf16.msra.mxu0 %v628
    %689 = vmatprep.subr.bf16.mxu0 %v633
    %690 = vmatpush1.bf16.msra.mxu0 %v632
    %691 = vmatprep.subr.bf16.mxu0 0
    %692 = vmatpush1.bf16.msra.mxu0 0
    %693 = vmatprep.subr.bf16.mxu0 0
    %694 = vmatpush1.bf16.msra.mxu0 0
    %695 = vmatprep.subr.bf16.mxu0 0
    %696 = vmatpush1.bf16.msra.mxu0 0
    %697 = vmatprep.subr.bf16.mxu0 0
    %698 = vmatpush1.bf16.msra.mxu0 0
    %699 = vmatprep.subr.bf16.mxu0 0
    %700 = vmatpush1.bf16.msra.mxu0 0
    %701 = vmatprep.subr.bf16.mxu0 0
    %702 = vmatpush1.bf16.msra.mxu0 0
    %703 = vmatprep.subr.bf16.mxu0 0
    %704 = vmatpush1.bf16.msra.mxu0 0
    %705 = vmatprep.subr.bf16.mxu0 0
    %706 = vmatpush1.bf16.msra.mxu0 0
    %707 = vmatprep.mubr.bf16.mxu0 0
    %708 = vmatmul.mubr.bf16.gmra.mrb[0].mxu0 0
    %v709 = vpop.f32.mrb[0].mxu0
    %v710 = vadd.f32 0.0, %v709
    %v711 = vpop.f32.mrb[0].mxu0
    %v712 = vadd.f32 0.0, %v711
    %v713 = vpop.f32.mrb[0].mxu0
    %v714 = vpop.f32.mrb[0].mxu0
    %715 = vdwg.mxu0
    %716 = vmatprep.subr.bf16.mxu0 %v571
    %717 = vmatpush1.bf16.msra.mxu0 %v570
    %718 = vmatprep.subr.bf16.mxu0 %v575
    %719 = vmatpush1.bf16.msra.mxu0 %v574
    %720 = vmatprep.subr.bf16.mxu0 %v579
    %721 = vmatpush1.bf16.msra.mxu0 %v578
    %722 = vmatprep.subr.bf16.mxu0 %v583
    %723 = vmatpush1.bf16.msra.mxu0 %v582
    %724 = vmatprep.subr.bf16.mxu0 %v587
    %725 = vmatpush1.bf16.msra.mxu0 %v586
    %726 = vmatprep.subr.bf16.mxu0 %v591
    %727 = vmatpush1.bf16.msra.mxu0 %v590
    %728 = vmatprep.subr.bf16.mxu0 %v595
    %729 = vmatpush1.bf16.msra.mxu0 %v594
    %730 = vmatprep.subr.bf16.mxu0 %v599
    %731 = vmatpush1.bf16.msra.mxu0 %v598
    %732 = vmatprep.subr.bf16.mxu0 0
    %733 = vmatpush1.bf16.msra.mxu0 0
    %734 = vmatprep.subr.bf16.mxu0 0
    %735 = vmatpush1.bf16.msra.mxu0 0
    %736 = vmatprep.subr.bf16.mxu0 0
    %737 = vmatpush1.bf16.msra.mxu0 0
    %738 = vmatprep.subr.bf16.mxu0 0
    %739 = vmatpush1.bf16.msra.mxu0 0
    %740 = vmatprep.subr.bf16.mxu0 0
    %741 = vmatpush1.bf16.msra.mxu0 0
    %742 = vmatprep.subr.bf16.mxu0 0
    %743 = vmatpush1.bf16.msra.mxu0 0
    %744 = vmatprep.subr.bf16.mxu0 0
    %745 = vmatpush1.bf16.msra.mxu0 0
    %746 = vmatprep.subr.bf16.mxu0 0
    %747 = vmatpush1.bf16.msra.mxu0 0
    %748 = vmatprep.mubr.bf16.mxu0 0
    %749 = vmatmul.mubr.bf16.gmra.mrb[0].mxu0 %v569
    %v750 = vpop.f32.mrb[0].mxu0
    %v751 = vadd.f32 %v669, %v750
    %v752 = vpop.f32.mrb[0].mxu0
    %v753 = vadd.f32 %v671, %v752
    %v754 = vpop.f32.mrb[0].mxu0
    %v755 = vpop.f32.mrb[0].mxu0
    %756 = vdwg.mxu0
    %757 = vmatprep.subr.bf16.mxu0 %v573
    %758 = vmatpush1.bf16.msra.mxu0 %v572
    %759 = vmatprep.subr.bf16.mxu0 %v577
    %760 = vmatpush1.bf16.msra.mxu0 %v576
    %761 = vmatprep.subr.bf16.mxu0 %v581
    %762 = vmatpush1.bf16.msra.mxu0 %v580
    %763 = vmatprep.subr.bf16.mxu0 %v585
    %764 = vmatpush1.bf16.msra.mxu0 %v584
    %765 = vmatprep.subr.bf16.mxu0 %v589
    %766 = vmatpush1.bf16.msra.mxu0 %v588
    %767 = vmatprep.subr.bf16.mxu0 %v593
    %768 = vmatpush1.bf16.msra.mxu0 %v592
    %769 = vmatprep.subr.bf16.mxu0 %v597
    %770 = vmatpush1.bf16.msra.mxu0 %v596
    %771 = vmatprep.subr.bf16.mxu0 %v601
    %772 = vmatpush1.bf16.msra.mxu0 %v600
    %773 = vmatprep.subr.bf16.mxu0 0
    %774 = vmatpush1.bf16.msra.mxu0 0
    %775 = vmatprep.subr.bf16.mxu0 0
    %776 = vmatpush1.bf16.msra.mxu0 0
    %777 = vmatprep.subr.bf16.mxu0 0
    %778 = vmatpush1.bf16.msra.mxu0 0
    %779 = vmatprep.subr.bf16.mxu0 0
    %780 = vmatpush1.bf16.msra.mxu0 0
    %781 = vmatprep.subr.bf16.mxu0 0
    %782 = vmatpush1.bf16.msra.mxu0 0
    %783 = vmatprep.subr.bf16.mxu0 0
    %784 = vmatpush1.bf16.msra.mxu0 0
    %785 = vmatprep.subr.bf16.mxu0 0
    %786 = vmatpush1.bf16.msra.mxu0 0
    %787 = vmatprep.subr.bf16.mxu0 0
    %788 = vmatpush1.bf16.msra.mxu0 0
    %789 = vmatprep.mubr.bf16.mxu0 0
    %790 = vmatmul.mubr.bf16.gmra.mrb[0].mxu0 %v569
    %v791 = vpop.f32.mrb[0].mxu0
    %v792 = vadd.f32 %v710, %v791
    %v793 = vpop.f32.mrb[0].mxu0
    %v794 = vadd.f32 %v712, %v793
    %v795 = vpop.f32.mrb[0].mxu0
    %v796 = vpop.f32.mrb[0].mxu0
    %797 = vdwg.mxu0
    %v798 = vld [vmem:[%s5] sm:$0xf]
    %v800 = vlaneseq
    %v801 = vshrl.u32 %v800, 7
    %v802 = vsub.s32 0, %v801
    %v803 = vrot.slane %v798, %v802
    %v804 = vlaneseq
    %v805 = vshrl.u32 %v804, 7
    %v806 = vsub.s32 1, %v805
    %v807 = vrot.slane %v798, %v806
    %v808 = vlaneseq
    %v809 = vshrl.u32 %v808, 7
    %v810 = vsub.s32 2, %v809
    %v811 = vrot.slane %v798, %v810
    %v812 = vlaneseq
    %v813 = vshrl.u32 %v812, 7
    %v814 = vsub.s32 3, %v813
    %v815 = vrot.slane %v798, %v814
    %v820 = vadd.f32 %v751, %v803
    %v821 = vadd.f32 %v753, %v807
    %v822 = vadd.f32 %v792, %v811
    %v823 = vadd.f32 %v794, %v815
    %v824 = vxor.u32 %v820, 2147483648
    %v825 = vmul.f32 %v824, 1.442695
    %v826 = vpow.pop %v825
    %v827 = vadd.f32 %v826, 1.0
    %v828 = vrcp.pop %v827
    %v829 = vmul.f32 1.0, %v828
    %v830 = vxor.u32 %v821, 2147483648
    %v831 = vmul.f32 %v830, 1.442695
    %v832 = vpow.pop %v831
    %v833 = vadd.f32 %v832, 1.0
    %v834 = vrcp.pop %v833
    %v835 = vmul.f32 1.0, %v834
    %v836 = vtanh.pop %v822
    %v837 = vxor.u32 %v823, 2147483648
    %v838 = vmul.f32 %v837, 1.442695
    %v839 = vpow.pop %v838
    %v840 = vadd.f32 %v839, 1.0
    %v841 = vrcp.pop %v840
    %v842 = vmul.f32 1.0, %v841
    %v843 = vmul.f32 %v835, 0.0
    %v844 = vmul.f32 %v829, %v836
    %v845 = vadd.f32 %v843, %v844
    %v846 = vtanh.pop %v845
    %v847 = vmul.f32 %v842, %v846
    %848 = vst [vmem:[#allocation4] sm:$0x1] %v847
    %s849 = scalar_lea.vmem [#allocation3], 1
    %v850 = vld [vmem:[%s849] ss:$8 sm:$0xf]
    %v851 = vld [vmem:[#allocation7] sm:$0xff]
    %v852 = vld [vmem:[#allocation7 + $0x8] sm:$0xff]
    %v853 = vld [vmem:[#allocation7 + $0x10] sm:$0xff]
    %v854 = vld [vmem:[#allocation7 + $0x18] sm:$0xff]
    %v855 = vld [vmem:[#allocation7 + $0x20] sm:$0xff]
    %v856 = vld [vmem:[#allocation7 + $0x28] sm:$0xff]
    %v857 = vld [vmem:[#allocation7 + $0x30] sm:$0xff]
    %v858 = vld [vmem:[#allocation7 + $0x38] sm:$0xff]
    %v859 = vld [vmem:[#allocation7 + $0x40] sm:$0xff]
    %v860 = vld [vmem:[#allocation7 + $0x48] sm:$0xff]
    %v861 = vld [vmem:[#allocation7 + $0x50] sm:$0xff]
    %v862 = vld [vmem:[#allocation7 + $0x58] sm:$0xff]
    %v863 = vld [vmem:[#allocation7 + $0x60] sm:$0xff]
    %v864 = vld [vmem:[#allocation7 + $0x68] sm:$0xff]
    %v865 = vld [vmem:[#allocation7 + $0x70] sm:$0xff]
    %v866 = vld [vmem:[#allocation7 + $0x78] sm:$0xff]
    %v867 = vld [vmem:[#allocation7 + $0x80] sm:$0xff]
    %v868 = vld [vmem:[#allocation7 + $0x88] sm:$0xff]
    %v869 = vld [vmem:[#allocation7 + $0x90] sm:$0xff]
    %v870 = vld [vmem:[#allocation7 + $0x98] sm:$0xff]
    %v871 = vld [vmem:[#allocation7 + $0xa0] sm:$0xff]
    %v872 = vld [vmem:[#allocation7 + $0xa8] sm:$0xff]
    %v873 = vld [vmem:[#allocation7 + $0xb0] sm:$0xff]
    %v874 = vld [vmem:[#allocation7 + $0xb8] sm:$0xff]
    %v875 = vld [vmem:[#allocation7 + $0xc0] sm:$0xff]
    %v876 = vld [vmem:[#allocation7 + $0xc8] sm:$0xff]
    %v877 = vld [vmem:[#allocation7 + $0xd0] sm:$0xff]
    %v878 = vld [vmem:[#allocation7 + $0xd8] sm:$0xff]
    %v879 = vld [vmem:[#allocation7 + $0xe0] sm:$0xff]
    %v880 = vld [vmem:[#allocation7 + $0xe8] sm:$0xff]
    %v881 = vld [vmem:[#allocation7 + $0xf0] sm:$0xff]
    %v882 = vld [vmem:[#allocation7 + $0xf8] sm:$0xff]
    %v915 = vunpack.c.l.b16 %v851
    %v916 = vunpack.c.h.b16 %v851
    %v917 = vunpack.c.l.b16 %v852
    %v918 = vunpack.c.h.b16 %v852
    %v919 = vunpack.c.l.b16 %v853
    %v920 = vunpack.c.h.b16 %v853
    %v921 = vunpack.c.l.b16 %v854
    %v922 = vunpack.c.h.b16 %v854
    %v923 = vunpack.c.l.b16 %v855
    %v924 = vunpack.c.h.b16 %v855
    %v925 = vunpack.c.l.b16 %v856
    %v926 = vunpack.c.h.b16 %v856
    %v927 = vunpack.c.l.b16 %v857
    %v928 = vunpack.c.h.b16 %v857
    %v929 = vunpack.c.l.b16 %v858
    %v930 = vunpack.c.h.b16 %v858
    %v931 = vunpack.c.l.b16 %v859
    %v932 = vunpack.c.h.b16 %v859
    %v933 = vunpack.c.l.b16 %v860
    %v934 = vunpack.c.h.b16 %v860
    %v935 = vunpack.c.l.b16 %v861
    %v936 = vunpack.c.h.b16 %v861
    %v937 = vunpack.c.l.b16 %v862
    %v938 = vunpack.c.h.b16 %v862
    %v939 = vunpack.c.l.b16 %v863
    %v940 = vunpack.c.h.b16 %v863
    %v941 = vunpack.c.l.b16 %v864
    %v942 = vunpack.c.h.b16 %v864
    %v943 = vunpack.c.l.b16 %v865
    %v944 = vunpack.c.h.b16 %v865
    %v945 = vunpack.c.l.b16 %v866
    %v946 = vunpack.c.h.b16 %v866
    %v947 = vunpack.c.l.b16 %v867
    %v948 = vunpack.c.h.b16 %v867
    %v949 = vunpack.c.l.b16 %v868
    %v950 = vunpack.c.h.b16 %v868
    %v951 = vunpack.c.l.b16 %v869
    %v952 = vunpack.c.h.b16 %v869
    %v953 = vunpack.c.l.b16 %v870
    %v954 = vunpack.c.h.b16 %v870
    %v955 = vunpack.c.l.b16 %v871
    %v956 = vunpack.c.h.b16 %v871
    %v957 = vunpack.c.l.b16 %v872
    %v958 = vunpack.c.h.b16 %v872
    %v959 = vunpack.c.l.b16 %v873
    %v960 = vunpack.c.h.b16 %v873
    %v961 = vunpack.c.l.b16 %v874
    %v962 = vunpack.c.h.b16 %v874
    %v963 = vunpack.c.l.b16 %v875
    %v964 = vunpack.c.h.b16 %v875
    %v965 = vunpack.c.l.b16 %v876
    %v966 = vunpack.c.h.b16 %v876
    %v967 = vunpack.c.l.b16 %v877
    %v968 = vunpack.c.h.b16 %v877
    %v969 = vunpack.c.l.b16 %v878
    %v970 = vunpack.c.h.b16 %v878
    %v971 = vunpack.c.l.b16 %v879
    %v972 = vunpack.c.h.b16 %v879
    %v973 = vunpack.c.l.b16 %v880
    %v974 = vunpack.c.h.b16 %v880
    %v975 = vunpack.c.l.b16 %v881
    %v976 = vunpack.c.h.b16 %v881
    %v977 = vunpack.c.l.b16 %v882
    %v978 = vunpack.c.h.b16 %v882
    %v979 = vpack.c.b16 %v919, %v915
    %v980 = vpack.c.b16 %v920, %v916
    %v981 = vpack.c.b16 %v921, %v917
    %v982 = vpack.c.b16 %v922, %v918
    %v983 = vpack.c.b16 %v927, %v923
    %v984 = vpack.c.b16 %v928, %v924
    %v985 = vpack.c.b16 %v929, %v925
    %v986 = vpack.c.b16 %v930, %v926
    %v987 = vpack.c.b16 %v935, %v931
    %v988 = vpack.c.b16 %v936, %v932
    %v989 = vpack.c.b16 %v937, %v933
    %v990 = vpack.c.b16 %v938, %v934
    %v991 = vpack.c.b16 %v943, %v939
    %v992 = vpack.c.b16 %v944, %v940
    %v993 = vpack.c.b16 %v945, %v941
    %v994 = vpack.c.b16 %v946, %v942
    %v995 = vpack.c.b16 %v951, %v947
    %v996 = vpack.c.b16 %v952, %v948
    %v997 = vpack.c.b16 %v953, %v949
    %v998 = vpack.c.b16 %v954, %v950
    %v999 = vpack.c.b16 %v959, %v955
    %v1000 = vpack.c.b16 %v960, %v956
    %v1001 = vpack.c.b16 %v961, %v957
    %v1002 = vpack.c.b16 %v962, %v958
    %v1003 = vpack.c.b16 %v967, %v963
    %v1004 = vpack.c.b16 %v968, %v964
    %v1005 = vpack.c.b16 %v969, %v965
    %v1006 = vpack.c.b16 %v970, %v966
    %v1007 = vpack.c.b16 %v975, %v971
    %v1008 = vpack.c.b16 %v976, %v972
    %v1009 = vpack.c.b16 %v977, %v973
    %v1010 = vpack.c.b16 %v978, %v974
    %1043 = vmatprep.subr.bf16.mxu0 %v980
    %1044 = vmatpush1.bf16.msra.mxu0 %v979
    %1045 = vmatprep.subr.bf16.mxu0 %v984
    %1046 = vmatpush1.bf16.msra.mxu0 %v983
    %1047 = vmatprep.subr.bf16.mxu0 %v988
    %1048 = vmatpush1.bf16.msra.mxu0 %v987
    %1049 = vmatprep.subr.bf16.mxu0 %v992
    %1050 = vmatpush1.bf16.msra.mxu0 %v991
    %1051 = vmatprep.subr.bf16.mxu0 %v996
    %1052 = vmatpush1.bf16.msra.mxu0 %v995
    %1053 = vmatprep.subr.bf16.mxu0 %v1000
    %1054 = vmatpush1.bf16.msra.mxu0 %v999
    %1055 = vmatprep.subr.bf16.mxu0 %v1004
    %1056 = vmatpush1.bf16.msra.mxu0 %v1003
    %1057 = vmatprep.subr.bf16.mxu0 %v1008
    %1058 = vmatpush1.bf16.msra.mxu0 %v1007
    %1059 = vmatprep.subr.bf16.mxu0 0
    %1060 = vmatpush1.bf16.msra.mxu0 0
    %1061 = vmatprep.subr.bf16.mxu0 0
    %1062 = vmatpush1.bf16.msra.mxu0 0
    %1063 = vmatprep.subr.bf16.mxu0 0
    %1064 = vmatpush1.bf16.msra.mxu0 0
    %1065 = vmatprep.subr.bf16.mxu0 0
    %1066 = vmatpush1.bf16.msra.mxu0 0
    %1067 = vmatprep.subr.bf16.mxu0 0
    %1068 = vmatpush1.bf16.msra.mxu0 0
    %1069 = vmatprep.subr.bf16.mxu0 0
    %1070 = vmatpush1.bf16.msra.mxu0 0
    %1071 = vmatprep.subr.bf16.mxu0 0
    %1072 = vmatpush1.bf16.msra.mxu0 0
    %1073 = vmatprep.subr.bf16.mxu0 0
    %1074 = vmatpush1.bf16.msra.mxu0 0
    %1075 = vmatprep.mubr.bf16.mxu0 0
    %1076 = vmatmul.mubr.bf16.gmra.mrb[0].mxu0 %v569
    %v1077 = vpop.f32.mrb[0].mxu0
    %v1078 = vadd.f32 0.0, %v1077
    %v1079 = vpop.f32.mrb[0].mxu0
    %v1080 = vadd.f32 0.0, %v1079
    %v1081 = vpop.f32.mrb[0].mxu0
    %v1082 = vpop.f32.mrb[0].mxu0
    %1083 = vdwg.mxu0
    %1084 = vmatprep.subr.bf16.mxu0 %v982
    %1085 = vmatpush1.bf16.msra.mxu0 %v981
    %1086 = vmatprep.subr.bf16.mxu0 %v986
    %1087 = vmatpush1.bf16.msra.mxu0 %v985
    %1088 = vmatprep.subr.bf16.mxu0 %v990
    %1089 = vmatpush1.bf16.msra.mxu0 %v989
    %1090 = vmatprep.subr.bf16.mxu0 %v994
    %1091 = vmatpush1.bf16.msra.mxu0 %v993
    %1092 = vmatprep.subr.bf16.mxu0 %v998
    %1093 = vmatpush1.bf16.msra.mxu0 %v997
    %1094 = vmatprep.subr.bf16.mxu0 %v1002
    %1095 = vmatpush1.bf16.msra.mxu0 %v1001
    %1096 = vmatprep.subr.bf16.mxu0 %v1006
    %1097 = vmatpush1.bf16.msra.mxu0 %v1005
    %1098 = vmatprep.subr.bf16.mxu0 %v1010
    %1099 = vmatpush1.bf16.msra.mxu0 %v1009
    %1100 = vmatprep.subr.bf16.mxu0 0
    %1101 = vmatpush1.bf16.msra.mxu0 0
    %1102 = vmatprep.subr.bf16.mxu0 0
    %1103 = vmatpush1.bf16.msra.mxu0 0
    %1104 = vmatprep.subr.bf16.mxu0 0
    %1105 = vmatpush1.bf16.msra.mxu0 0
    %1106 = vmatprep.subr.bf16.mxu0 0
    %1107 = vmatpush1.bf16.msra.mxu0 0
    %1108 = vmatprep.subr.bf16.mxu0 0
    %1109 = vmatpush1.bf16.msra.mxu0 0
    %1110 = vmatprep.subr.bf16.mxu0 0
    %1111 = vmatpush1.bf16.msra.mxu0 0
    %1112 = vmatprep.subr.bf16.mxu0 0
    %1113 = vmatpush1.bf16.msra.mxu0 0
    %1114 = vmatprep.subr.bf16.mxu0 0
    %1115 = vmatpush1.bf16.msra.mxu0 0
    %1116 = vmatprep.mubr.bf16.mxu0 0
    %1117 = vmatmul.mubr.bf16.gmra.mrb[0].mxu0 %v569
    %v1118 = vpop.f32.mrb[0].mxu0
    %v1119 = vadd.f32 0.0, %v1118
    %v1120 = vpop.f32.mrb[0].mxu0
    %v1121 = vadd.f32 0.0, %v1120
    %v1122 = vpop.f32.mrb[0].mxu0
    %v1123 = vpop.f32.mrb[0].mxu0
    %1124 = vdwg.mxu0
    %v1126 = vlaneseq
    %v1127 = vshrl.u32 %v1126, 7
    %v1128 = vsub.s32 0, %v1127
    %v1129 = vrot.slane %v850, %v1128
    %v1130 = vlaneseq
    %v1131 = vshrl.u32 %v1130, 7
    %v1132 = vsub.s32 1, %v1131
    %v1133 = vrot.slane %v850, %v1132
    %v1134 = vlaneseq
    %v1135 = vshrl.u32 %v1134, 7
    %v1136 = vsub.s32 2, %v1135
    %v1137 = vrot.slane %v850, %v1136
    %v1138 = vlaneseq
    %v1139 = vshrl.u32 %v1138, 7
    %v1140 = vsub.s32 3, %v1139
    %v1141 = vrot.slane %v850, %v1140
    %v1146 = vadd.f32 %v1129, %v1078
    %v1147 = vadd.f32 %v1133, %v1080
    %v1148 = vadd.f32 %v1137, %v1119
    %v1149 = vadd.f32 %v1141, %v1121
    %v1150 = vxor.u32 %v1146, 2147483648
    %v1151 = vmul.f32 %v1150, 1.442695
    %v1152 = vpow.pop %v1151
    %v1153 = vadd.f32 %v1152, 1.0
    %v1154 = vrcp.pop %v1153
    %v1155 = vmul.f32 1.0, %v1154
    %v1156 = vxor.u32 %v1147, 2147483648
    %v1157 = vmul.f32 %v1156, 1.442695
    %v1158 = vpow.pop %v1157
    %v1159 = vadd.f32 %v1158, 1.0
    %v1160 = vrcp.pop %v1159
    %v1161 = vmul.f32 1.0, %v1160
    %v1162 = vtanh.pop %v1148
    %v1163 = vxor.u32 %v1149, 2147483648
    %v1164 = vmul.f32 %v1163, 1.442695
    %v1165 = vpow.pop %v1164
    %v1166 = vadd.f32 %v1165, 1.0
    %v1167 = vrcp.pop %v1166
    %v1168 = vmul.f32 1.0, %v1167
    %v1169 = vmul.f32 %v1161, %v566
    %v1170 = vmul.f32 %v1155, %v1162
    %v1171 = vadd.f32 %v1169, %v1170
    %v1172 = vtanh.pop %v1171
    %v1173 = vmul.f32 %v1168, %v1172
    %v1174 = vpack.c.bf16 %v1173, %v1173
    %v1175 = vld [vmem:[#allocation2] sm:$0xff]
    %v1176 = vld [vmem:[#allocation2 + $0x8] sm:$0xff]
    %v1177 = vld [vmem:[#allocation2 + $0x10] sm:$0xff]
    %v1178 = vld [vmem:[#allocation2 + $0x18] sm:$0xff]
    %v1179 = vld [vmem:[#allocation2 + $0x20] sm:$0xff]
    %v1180 = vld [vmem:[#allocation2 + $0x28] sm:$0xff]
    %v1181 = vld [vmem:[#allocation2 + $0x30] sm:$0xff]
    %v1182 = vld [vmem:[#allocation2 + $0x38] sm:$0xff]
    %v1183 = vld [vmem:[#allocation2 + $0x40] sm:$0xff]
    %v1184 = vld [vmem:[#allocation2 + $0x48] sm:$0xff]
    %v1185 = vld [vmem:[#allocation2 + $0x50] sm:$0xff]
    %v1186 = vld [vmem:[#allocation2 + $0x58] sm:$0xff]
    %v1187 = vld [vmem:[#allocation2 + $0x60] sm:$0xff]
    %v1188 = vld [vmem:[#allocation2 + $0x68] sm:$0xff]
    %v1189 = vld [vmem:[#allocation2 + $0x70] sm:$0xff]
    %v1190 = vld [vmem:[#allocation2 + $0x78] sm:$0xff]
    %v1191 = vld [vmem:[#allocation2 + $0x80] sm:$0xff]
    %v1192 = vld [vmem:[#allocation2 + $0x88] sm:$0xff]
    %v1193 = vld [vmem:[#allocation2 + $0x90] sm:$0xff]
    %v1194 = vld [vmem:[#allocation2 + $0x98] sm:$0xff]
    %v1195 = vld [vmem:[#allocation2 + $0xa0] sm:$0xff]
    %v1196 = vld [vmem:[#allocation2 + $0xa8] sm:$0xff]
    %v1197 = vld [vmem:[#allocation2 + $0xb0] sm:$0xff]
    %v1198 = vld [vmem:[#allocation2 + $0xb8] sm:$0xff]
    %v1199 = vld [vmem:[#allocation2 + $0xc0] sm:$0xff]
    %v1200 = vld [vmem:[#allocation2 + $0xc8] sm:$0xff]
    %v1201 = vld [vmem:[#allocation2 + $0xd0] sm:$0xff]
    %v1202 = vld [vmem:[#allocation2 + $0xd8] sm:$0xff]
    %v1203 = vld [vmem:[#allocation2 + $0xe0] sm:$0xff]
    %v1204 = vld [vmem:[#allocation2 + $0xe8] sm:$0xff]
    %v1205 = vld [vmem:[#allocation2 + $0xf0] sm:$0xff]
    %v1206 = vld [vmem:[#allocation2 + $0xf8] sm:$0xff]
    %v1207 = vpack.c.bf16 %v847, %v847
    %v1208 = vld [vmem:[#allocation2 + $0x100] sm:$0xff]
    %v1209 = vld [vmem:[#allocation2 + $0x108] sm:$0xff]
    %v1210 = vld [vmem:[#allocation2 + $0x110] sm:$0xff]
    %v1211 = vld [vmem:[#allocation2 + $0x118] sm:$0xff]
    %v1212 = vld [vmem:[#allocation2 + $0x120] sm:$0xff]
    %v1213 = vld [vmem:[#allocation2 + $0x128] sm:$0xff]
    %v1214 = vld [vmem:[#allocation2 + $0x130] sm:$0xff]
    %v1215 = vld [vmem:[#allocation2 + $0x138] sm:$0xff]
    %v1216 = vld [vmem:[#allocation2 + $0x140] sm:$0xff]
    %v1217 = vld [vmem:[#allocation2 + $0x148] sm:$0xff]
    %v1218 = vld [vmem:[#allocation2 + $0x150] sm:$0xff]
    %v1219 = vld [vmem:[#allocation2 + $0x158] sm:$0xff]
    %v1220 = vld [vmem:[#allocation2 + $0x160] sm:$0xff]
    %v1221 = vld [vmem:[#allocation2 + $0x168] sm:$0xff]
    %v1222 = vld [vmem:[#allocation2 + $0x170] sm:$0xff]
    %v1223 = vld [vmem:[#allocation2 + $0x178] sm:$0xff]
    %v1224 = vld [vmem:[#allocation2 + $0x180] sm:$0xff]
    %v1225 = vld [vmem:[#allocation2 + $0x188] sm:$0xff]
    %v1226 = vld [vmem:[#allocation2 + $0x190] sm:$0xff]
    %v1227 = vld [vmem:[#allocation2 + $0x198] sm:$0xff]
    %v1228 = vld [vmem:[#allocation2 + $0x1a0] sm:$0xff]
    %v1229 = vld [vmem:[#allocation2 + $0x1a8] sm:$0xff]
    %v1230 = vld [vmem:[#allocation2 + $0x1b0] sm:$0xff]
    %v1231 = vld [vmem:[#allocation2 + $0x1b8] sm:$0xff]
    %v1232 = vld [vmem:[#allocation2 + $0x1c0] sm:$0xff]
    %v1233 = vld [vmem:[#allocation2 + $0x1c8] sm:$0xff]
    %v1234 = vld [vmem:[#allocation2 + $0x1d0] sm:$0xff]
    %v1235 = vld [vmem:[#allocation2 + $0x1d8] sm:$0xff]
    %v1236 = vld [vmem:[#allocation2 + $0x1e0] sm:$0xff]
    %v1237 = vld [vmem:[#allocation2 + $0x1e8] sm:$0xff]
    %v1238 = vld [vmem:[#allocation2 + $0x1f0] sm:$0xff]
    %v1239 = vld [vmem:[#allocation2 + $0x1f8] sm:$0xff]
    %1240 = vmatprep.subr.bf16.mxu0 %v1209
    %1241 = vmatpush1.bf16.msra.mxu0 %v1208
    %1242 = vmatprep.subr.bf16.mxu0 %v1213
    %1243 = vmatpush1.bf16.msra.mxu0 %v1212
    %1244 = vmatprep.subr.bf16.mxu0 %v1217
    %1245 = vmatpush1.bf16.msra.mxu0 %v1216
    %1246 = vmatprep.subr.bf16.mxu0 %v1221
    %1247 = vmatpush1.bf16.msra.mxu0 %v1220
    %1248 = vmatprep.subr.bf16.mxu0 %v1225
    %1249 = vmatpush1.bf16.msra.mxu0 %v1224
    %1250 = vmatprep.subr.bf16.mxu0 %v1229
    %1251 = vmatpush1.bf16.msra.mxu0 %v1228
    %1252 = vmatprep.subr.bf16.mxu0 %v1233
    %1253 = vmatpush1.bf16.msra.mxu0 %v1232
    %1254 = vmatprep.subr.bf16.mxu0 %v1237
    %1255 = vmatpush1.bf16.msra.mxu0 %v1236
    %1256 = vmatprep.subr.bf16.mxu0 0
    %1257 = vmatpush1.bf16.msra.mxu0 0
    %1258 = vmatprep.subr.bf16.mxu0 0
    %1259 = vmatpush1.bf16.msra.mxu0 0
    %1260 = vmatprep.subr.bf16.mxu0 0
    %1261 = vmatpush1.bf16.msra.mxu0 0
    %1262 = vmatprep.subr.bf16.mxu0 0
    %1263 = vmatpush1.bf16.msra.mxu0 0
    %1264 = vmatprep.subr.bf16.mxu0 0
    %1265 = vmatpush1.bf16.msra.mxu0 0
    %1266 = vmatprep.subr.bf16.mxu0 0
    %1267 = vmatpush1.bf16.msra.mxu0 0
    %1268 = vmatprep.subr.bf16.mxu0 0
    %1269 = vmatpush1.bf16.msra.mxu0 0
    %1270 = vmatprep.subr.bf16.mxu0 0
    %1271 = vmatpush1.bf16.msra.mxu0 0
    %1272 = vmatprep.mubr.bf16.mxu0 0
    %1273 = vmatmul.mubr.bf16.gmra.mrb[0].mxu0 %v1207
    %v1274 = vpop.f32.mrb[0].mxu0
    %v1275 = vadd.f32 0.0, %v1274
    %v1276 = vpop.f32.mrb[0].mxu0
    %v1277 = vadd.f32 0.0, %v1276
    %v1278 = vpop.f32.mrb[0].mxu0
    %v1279 = vpop.f32.mrb[0].mxu0
    %1280 = vdwg.mxu0
    %1281 = vmatprep.subr.bf16.mxu0 %v1211
    %1282 = vmatpush1.bf16.msra.mxu0 %v1210
    %1283 = vmatprep.subr.bf16.mxu0 %v1215
    %1284 = vmatpush1.bf16.msra.mxu0 %v1214
    %1285 = vmatprep.subr.bf16.mxu0 %v1219
    %1286 = vmatpush1.bf16.msra.mxu0 %v1218
    %1287 = vmatprep.subr.bf16.mxu0 %v1223
    %1288 = vmatpush1.bf16.msra.mxu0 %v1222
    %1289 = vmatprep.subr.bf16.mxu0 %v1227
    %1290 = vmatpush1.bf16.msra.mxu0 %v1226
    %1291 = vmatprep.subr.bf16.mxu0 %v1231
    %1292 = vmatpush1.bf16.msra.mxu0 %v1230
    %1293 = vmatprep.subr.bf16.mxu0 %v1235
    %1294 = vmatpush1.bf16.msra.mxu0 %v1234
    %1295 = vmatprep.subr.bf16.mxu0 %v1239
    %1296 = vmatpush1.bf16.msra.mxu0 %v1238
    %1297 = vmatprep.subr.bf16.mxu0 0
    %1298 = vmatpush1.bf16.msra.mxu0 0
    %1299 = vmatprep.subr.bf16.mxu0 0
    %1300 = vmatpush1.bf16.msra.mxu0 0
    %1301 = vmatprep.subr.bf16.mxu0 0
    %1302 = vmatpush1.bf16.msra.mxu0 0
    %1303 = vmatprep.subr.bf16.mxu0 0
    %1304 = vmatpush1.bf16.msra.mxu0 0
    %1305 = vmatprep.subr.bf16.mxu0 0
    %1306 = vmatpush1.bf16.msra.mxu0 0
    %1307 = vmatprep.subr.bf16.mxu0 0
    %1308 = vmatpush1.bf16.msra.mxu0 0
    %1309 = vmatprep.subr.bf16.mxu0 0
    %1310 = vmatpush1.bf16.msra.mxu0 0
    %1311 = vmatprep.subr.bf16.mxu0 0
    %1312 = vmatpush1.bf16.msra.mxu0 0
    %1313 = vmatprep.mubr.bf16.mxu0 0
    %1314 = vmatmul.mubr.bf16.gmra.mrb[0].mxu0 %v1207
    %v1315 = vpop.f32.mrb[0].mxu0
    %v1316 = vadd.f32 0.0, %v1315
    %v1317 = vpop.f32.mrb[0].mxu0
    %v1318 = vadd.f32 0.0, %v1317
    %v1319 = vpop.f32.mrb[0].mxu0
    %v1320 = vpop.f32.mrb[0].mxu0
    %1321 = vdwg.mxu0
    %1322 = vmatprep.subr.bf16.mxu0 %v1176
    %1323 = vmatpush1.bf16.msra.mxu0 %v1175
    %1324 = vmatprep.subr.bf16.mxu0 %v1180
    %1325 = vmatpush1.bf16.msra.mxu0 %v1179
    %1326 = vmatprep.subr.bf16.mxu0 %v1184
    %1327 = vmatpush1.bf16.msra.mxu0 %v1183
    %1328 = vmatprep.subr.bf16.mxu0 %v1188
    %1329 = vmatpush1.bf16.msra.mxu0 %v1187
    %1330 = vmatprep.subr.bf16.mxu0 %v1192
    %1331 = vmatpush1.bf16.msra.mxu0 %v1191
    %1332 = vmatprep.subr.bf16.mxu0 %v1196
    %1333 = vmatpush1.bf16.msra.mxu0 %v1195
    %1334 = vmatprep.subr.bf16.mxu0 %v1200
    %1335 = vmatpush1.bf16.msra.mxu0 %v1199
    %1336 = vmatprep.subr.bf16.mxu0 %v1204
    %1337 = vmatpush1.bf16.msra.mxu0 %v1203
    %1338 = vmatprep.subr.bf16.mxu0 0
    %1339 = vmatpush1.bf16.msra.mxu0 0
    %1340 = vmatprep.subr.bf16.mxu0 0
    %1341 = vmatpush1.bf16.msra.mxu0 0
    %1342 = vmatprep.subr.bf16.mxu0 0
    %1343 = vmatpush1.bf16.msra.mxu0 0
    %1344 = vmatprep.subr.bf16.mxu0 0
    %1345 = vmatpush1.bf16.msra.mxu0 0
    %1346 = vmatprep.subr.bf16.mxu0 0
    %1347 = vmatpush1.bf16.msra.mxu0 0
    %1348 = vmatprep.subr.bf16.mxu0 0
    %1349 = vmatpush1.bf16.msra.mxu0 0
    %1350 = vmatprep.subr.bf16.mxu0 0
    %1351 = vmatpush1.bf16.msra.mxu0 0
    %1352 = vmatprep.subr.bf16.mxu0 0
    %1353 = vmatpush1.bf16.msra.mxu0 0
    %1354 = vmatprep.mubr.bf16.mxu0 0
    %1355 = vmatmul.mubr.bf16.gmra.mrb[0].mxu0 %v1174
    %v1356 = vpop.f32.mrb[0].mxu0
    %v1357 = vadd.f32 %v1275, %v1356
    %v1358 = vpop.f32.mrb[0].mxu0
    %v1359 = vadd.f32 %v1277, %v1358
    %v1360 = vpop.f32.mrb[0].mxu0
    %v1361 = vpop.f32.mrb[0].mxu0
    %1362 = vdwg.mxu0
    %1363 = vmatprep.subr.bf16.mxu0 %v1178
    %1364 = vmatpush1.bf16.msra.mxu0 %v1177
    %1365 = vmatprep.subr.bf16.mxu0 %v1182
    %1366 = vmatpush1.bf16.msra.mxu0 %v1181
    %1367 = vmatprep.subr.bf16.mxu0 %v1186
    %1368 = vmatpush1.bf16.msra.mxu0 %v1185
    %1369 = vmatprep.subr.bf16.mxu0 %v1190
    %1370 = vmatpush1.bf16.msra.mxu0 %v1189
    %1371 = vmatprep.subr.bf16.mxu0 %v1194
    %1372 = vmatpush1.bf16.msra.mxu0 %v1193
    %1373 = vmatprep.subr.bf16.mxu0 %v1198
    %1374 = vmatpush1.bf16.msra.mxu0 %v1197
    %1375 = vmatprep.subr.bf16.mxu0 %v1202
    %1376 = vmatpush1.bf16.msra.mxu0 %v1201
    %1377 = vmatprep.subr.bf16.mxu0 %v1206
    %1378 = vmatpush1.bf16.msra.mxu0 %v1205
    %1379 = vmatprep.subr.bf16.mxu0 0
    %1380 = vmatpush1.bf16.msra.mxu0 0
    %1381 = vmatprep.subr.bf16.mxu0 0
    %1382 = vmatpush1.bf16.msra.mxu0 0
    %1383 = vmatprep.subr.bf16.mxu0 0
    %1384 = vmatpush1.bf16.msra.mxu0 0
    %1385 = vmatprep.subr.bf16.mxu0 0
    %1386 = vmatpush1.bf16.msra.mxu0 0
    %1387 = vmatprep.subr.bf16.mxu0 0
    %1388 = vmatpush1.bf16.msra.mxu0 0
    %1389 = vmatprep.subr.bf16.mxu0 0
    %1390 = vmatpush1.bf16.msra.mxu0 0
    %1391 = vmatprep.subr.bf16.mxu0 0
    %1392 = vmatpush1.bf16.msra.mxu0 0
    %1393 = vmatprep.subr.bf16.mxu0 0
    %1394 = vmatpush1.bf16.msra.mxu0 0
    %1395 = vmatprep.mubr.bf16.mxu0 0
    %1396 = vmatmul.mubr.bf16.gmra.mrb[0].mxu0 %v1174
    %v1397 = vpop.f32.mrb[0].mxu0
    %v1398 = vadd.f32 %v1316, %v1397
    %v1399 = vpop.f32.mrb[0].mxu0
    %v1400 = vadd.f32 %v1318, %v1399
    %v1401 = vpop.f32.mrb[0].mxu0
    %v1402 = vpop.f32.mrb[0].mxu0
    %1403 = vdwg.mxu0
    %v1404 = vld [vmem:[%s5] sm:$0xf]
    %v1406 = vlaneseq
    %v1407 = vshrl.u32 %v1406, 7
    %v1408 = vsub.s32 0, %v1407
    %v1409 = vrot.slane %v1404, %v1408
    %v1410 = vlaneseq
    %v1411 = vshrl.u32 %v1410, 7
    %v1412 = vsub.s32 1, %v1411
    %v1413 = vrot.slane %v1404, %v1412
    %v1414 = vlaneseq
    %v1415 = vshrl.u32 %v1414, 7
    %v1416 = vsub.s32 2, %v1415
    %v1417 = vrot.slane %v1404, %v1416
    %v1418 = vlaneseq
    %v1419 = vshrl.u32 %v1418, 7
    %v1420 = vsub.s32 3, %v1419
    %v1421 = vrot.slane %v1404, %v1420
    %v1426 = vadd.f32 %v1357, %v1409
    %v1427 = vadd.f32 %v1359, %v1413
    %v1428 = vadd.f32 %v1398, %v1417
    %v1429 = vadd.f32 %v1400, %v1421
    %v1430 = vxor.u32 %v1426, 2147483648
    %v1431 = vmul.f32 %v1430, 1.442695
    %v1432 = vpow.pop %v1431
    %v1433 = vadd.f32 %v1432, 1.0
    %v1434 = vrcp.pop %v1433
    %v1435 = vmul.f32 1.0, %v1434
    %v1436 = vxor.u32 %v1427, 2147483648
    %v1437 = vmul.f32 %v1436, 1.442695
    %v1438 = vpow.pop %v1437
    %v1439 = vadd.f32 %v1438, 1.0
    %v1440 = vrcp.pop %v1439
    %v1441 = vmul.f32 1.0, %v1440
    %v1442 = vtanh.pop %v1428
    %v1443 = vxor.u32 %v1429, 2147483648
    %v1444 = vmul.f32 %v1443, 1.442695
    %v1445 = vpow.pop %v1444
    %v1446 = vadd.f32 %v1445, 1.0
    %v1447 = vrcp.pop %v1446
    %v1448 = vmul.f32 1.0, %v1447
    %v1449 = vmul.f32 %v1441, %v845
    %v1450 = vmul.f32 %v1435, %v1442
    %v1451 = vadd.f32 %v1449, %v1450
    %v1452 = vtanh.pop %v1451
    %v1453 = vmul.f32 %v1448, %v1452
    %1454 = vst [vmem:[#allocation4 + $0x1] sm:$0x1] %v1453
    %v1455 = vld [vmem:[#allocation4] sm:$0xff]
    %v1456 = vmax.f32 %v1455, 0.0
    %v1457 = vld [vmem:[%s6] sm:$0xff]
    %v1458 = vld [vmem:[%s6 + $0x8] sm:$0xff]
    %v1459 = vld [vmem:[%s6 + $0x10] sm:$0xff]
    %v1460 = vld [vmem:[%s6 + $0x18] sm:$0xff]
    %v1461 = vld [vmem:[%s6 + $0x20] sm:$0xff]
    %v1462 = vld [vmem:[%s6 + $0x28] sm:$0xff]
    %v1463 = vld [vmem:[%s6 + $0x30] sm:$0xff]
    %v1464 = vld [vmem:[%s6 + $0x38] sm:$0xff]
    %v1465 = vld [vmem:[%s6 + $0x40] sm:$0xff]
    %v1466 = vld [vmem:[%s6 + $0x48] sm:$0xff]
    %v1467 = vld [vmem:[%s6 + $0x50] sm:$0xff]
    %v1468 = vld [vmem:[%s6 + $0x58] sm:$0xff]
    %v1469 = vld [vmem:[%s6 + $0x60] sm:$0xff]
    %v1470 = vld [vmem:[%s6 + $0x68] sm:$0xff]
    %v1471 = vld [vmem:[%s6 + $0x70] sm:$0xff]
    %v1472 = vld [vmem:[%s6 + $0x78] sm:$0xff]
    %v1473 = vld [vmem:[#allocation6] sm:$0x1]
    %v1475 = vlaneseq
    %v1476 = vshrl.u32 %v1475, 7
    %v1477 = vsub.s32 0, %v1476
    %v1478 = vrot.slane %v1473, %v1477
    %1480 = vmatprep.subr.mxu0 0.0
    %1481 = vmatpush1.msra.mxu0 %v1457
    %1482 = vmatprep.subr.mxu0 0.0
    %1483 = vmatpush1.msra.mxu0 %v1458
    %1484 = vmatprep.subr.mxu0 0.0
    %1485 = vmatpush1.msra.mxu0 %v1459
    %1486 = vmatprep.subr.mxu0 0.0
    %1487 = vmatpush1.msra.mxu0 %v1460
    %1488 = vmatprep.subr.mxu0 0.0
    %1489 = vmatpush1.msra.mxu0 %v1461
    %1490 = vmatprep.subr.mxu0 0.0
    %1491 = vmatpush1.msra.mxu0 %v1462
    %1492 = vmatprep.subr.mxu0 0.0
    %1493 = vmatpush1.msra.mxu0 %v1463
    %1494 = vmatprep.subr.mxu0 0.0
    %1495 = vmatpush1.msra.mxu0 %v1464
    %1496 = vmatprep.subr.mxu0 0.0
    %1497 = vmatpush1.msra.mxu0 %v1465
    %1498 = vmatprep.subr.mxu0 0.0
    %1499 = vmatpush1.msra.mxu0 %v1466
    %1500 = vmatprep.subr.mxu0 0.0
    %1501 = vmatpush1.msra.mxu0 %v1467
    %1502 = vmatprep.subr.mxu0 0.0
    %1503 = vmatpush1.msra.mxu0 %v1468
    %1504 = vmatprep.subr.mxu0 0.0
    %1505 = vmatpush1.msra.mxu0 %v1469
    %1506 = vmatprep.subr.mxu0 0.0
    %1507 = vmatpush1.msra.mxu0 %v1470
    %1508 = vmatprep.subr.mxu0 0.0
    %1509 = vmatpush1.msra.mxu0 %v1471
    %1510 = vmatprep.subr.mxu0 0.0
    %1511 = vmatpush1.msra.mxu0 %v1472
    %1512 = vmatprep.subr.mxu0 0.0
    %1513 = vmatpush1.msra.mxu0 0.0
    %1514 = vmatprep.subr.mxu0 0.0
    %1515 = vmatpush1.msra.mxu0 0.0
    %1516 = vmatprep.subr.mxu0 0.0
    %1517 = vmatpush1.msra.mxu0 0.0
    %1518 = vmatprep.subr.mxu0 0.0
    %1519 = vmatpush1.msra.mxu0 0.0
    %1520 = vmatprep.subr.mxu0 0.0
    %1521 = vmatpush1.msra.mxu0 0.0
    %1522 = vmatprep.subr.mxu0 0.0
    %1523 = vmatpush1.msra.mxu0 0.0
    %1524 = vmatprep.subr.mxu0 0.0
    %1525 = vmatpush1.msra.mxu0 0.0
    %1526 = vmatprep.subr.mxu0 0.0
    %1527 = vmatpush1.msra.mxu0 0.0
    %1528 = vmatprep.subr.mxu0 0.0
    %1529 = vmatpush1.msra.mxu0 0.0
    %1530 = vmatprep.subr.mxu0 0.0
    %1531 = vmatpush1.msra.mxu0 0.0
    %1532 = vmatprep.subr.mxu0 0.0
    %1533 = vmatpush1.msra.mxu0 0.0
    %1534 = vmatprep.subr.mxu0 0.0
    %1535 = vmatpush1.msra.mxu0 0.0
    %1536 = vmatprep.subr.mxu0 0.0
    %1537 = vmatpush1.msra.mxu0 0.0
    %1538 = vmatprep.subr.mxu0 0.0
    %1539 = vmatpush1.msra.mxu0 0.0
    %1540 = vmatprep.subr.mxu0 0.0
    %1541 = vmatpush1.msra.mxu0 0.0
    %1542 = vmatprep.subr.mxu0 0.0
    %1543 = vmatpush1.msra.mxu0 0.0
    %1544 = vmatprep.mubr.f32.mxu0 0.0
    %1545 = vmatmul.mubr.f32.gmra.mrb[0].mxu0 %v1456
    %v1546 = vpop.f32.mrb[0].mxu0
    %v1547 = vadd.f32 %v1478, %v1546
    %v1548 = vpop.f32.mrb[0].mxu0
    %1549 = vdwg.mxu0
    %v1550 = vxor.u32 %v1547, 2147483648
    %v1551 = vmul.f32 %v1550, 1.442695
    %v1552 = vpow.pop %v1551
    %v1553 = vadd.f32 %v1552, 1.0
    %v1554 = vrcp.pop %v1553
    %v1555 = vmul.f32 1.0, %v1554
    %vm1556 = vcmask 1024
    %1557 = vst.msk [vmem:[%s8] sm:$0x3] %vm1556, %v1555
    // Predicated region
    $region34: #{tpu_custom_call.1} parent=1 // pred_check
      _
    $region35: #{tpu_custom_call.1} parent=1 // pred_check_branch
      %1559 = sbr.rel (0) target = $region37
    $region36: #{tpu_custom_call.1} parent=1 // pred_region
      _
    $region37: #{tpu_custom_call.1} parent=1 // pred_fallthru
      _
    // Predicated region
    $region38: #{tpu_custom_call.1} parent=1 // pred_check
      _
    $region39: #{tpu_custom_call.1} parent=1 // pred_check_branch
      %1561 = sbr.rel (0) target = $region41
    $region40: #{tpu_custom_call.1} parent=1 // pred_region
      _
    $region41: #{tpu_custom_call.1} parent=1 // pred_fallthru
      _
    %1562 = vsyncpa [#allocation8], 1
  %1563 = vsyncmov [#allocation5]
  %s1564 = vpop.sfrf %1563
  %p1565 = scmp.eq.s32.totalorder %s1564, 0
  %p1566 = pneg %p1565
  %1568 = shalt.err (%p1566)

</llo_original>
